<compile_context>
chip_gen: v6e
topology: v6e:2x2x1
jax: 0.10.0
libtpu: 0.0.40
codegen_flags: <defaults>
</compile_context>

<pallas_src>
import functools

import jax
import jax.numpy as jnp
from jax.experimental import pallas as pl
from jax.experimental.pallas import tpu as pltpu


def _round_up(n, m):
    return (n + m - 1) // m * m


def _pad_gate_cols(w, h, hp):
    """Pad the 4H gate axis [i|f|g|o] so each gate block is hp (128-aligned) wide."""
    if hp == h:
        return w
    lead = w.shape[:-1]
    w4 = w.reshape(lead + (4, h))
    w4 = jnp.pad(w4, [(0, 0)] * len(lead) + [(0, 0), (0, hp - h)])
    return w4.reshape(lead + (4 * hp,))


def _pad_rows(w, h, hp):
    return jnp.pad(w, ((0, hp - h), (0, 0))) if hp != h else w


def _lstm_kernel(x_ref, wih0_ref, whh0_ref, b0_ref, w1_ref, b1_ref,
                 fcw_ref, fcb_ref, out_ref,
                 h0_ref, c0_ref, h1_ref, c1_ref, *, tb, bp, hp):
    """One grid step = one block of `tb` timesteps for all (padded) batch rows."""

    @pl.when(pl.program_id(0) == 0)
    def _():
        h0_ref[...] = jnp.zeros_like(h0_ref)
        c0_ref[...] = jnp.zeros_like(c0_ref)
        h1_ref[...] = jnp.zeros_like(h1_ref)
        c1_ref[...] = jnp.zeros_like(c1_ref)

    # Layer-0 input projection for the whole time block in one MXU matmul:
    # (tb*bp, D) @ (D, 4*hp) -> (tb*bp, 4*hp). Fills the M dimension.
    xg0 = jnp.dot(x_ref[...], wih0_ref[...], preferred_element_type=jnp.float32)

    whh0 = whh0_ref[...]
    b0 = b0_ref[...]
    w1 = w1_ref[...]            # stacked [W_ih1; W_hh1] : (2*hp, 4*hp)
    b1 = b1_ref[...]

    h0 = h0_ref[...]
    c0 = c0_ref[...]
    h1 = h1_ref[...]
    c1 = c1_ref[...]

    def gates_to_hc(gates, c):
        # PyTorch gate order [i, f, g, o]; each slice is 128-lane aligned (hp).
        i = jax.nn.sigmoid(gates[:, 0 * hp:1 * hp])
        f = jax.nn.sigmoid(gates[:, 1 * hp:2 * hp])
        g = jnp.tanh(gates[:, 2 * hp:3 * hp])
        o = jax.nn.sigmoid(gates[:, 3 * hp:4 * hp])
        c_new = f * c + i * g
        h_new = o * jnp.tanh(c_new)
        return h_new, c_new

    # Static unroll over the (small) time block; the recurrence is serial.
    for t in range(tb):
        # Layer 0: precomputed input projection + recurrent projection.
        g0 = (xg0[t * bp:(t + 1) * bp, :]
              + jnp.dot(h0, whh0, preferred_element_type=jnp.float32)
              + b0)
        h0, c0 = gates_to_hc(g0, c0)

        # Layer 1: fused [h0, h1] @ [W_ih1; W_hh1] (one dot, K = 2*hp).
        xh = jnp.concatenate([h0, h1], axis=1)
        g1 = jnp.dot(xh, w1, preferred_element_type=jnp.float32) + b1
        h1, c1 = gates_to_hc(g1, c1)

    h0_ref[...] = h0
    c0_ref[...] = c0
    h1_ref[...] = h1
    c1_ref[...] = c1

    @pl.when(pl.program_id(0) == pl.num_programs(0) - 1)
    def _():
        pred = (jnp.dot(h1, fcw_ref[...], preferred_element_type=jnp.float32)
                + fcb_ref[...])
        out_ref[...] = pred.astype(out_ref.dtype)


def lstm_model_forward(x, params, *, time_block=8):
    """x: (B, T, D) batch_first, like the PyTorch module. Returns (B, output_len)."""
    B, T, D = x.shape
    H = params["whh0"].shape[0]
    out_len = params["fcw"].shape[1]

    Hp = _round_up(H, 128)      # lane-aligned hidden (each gate block = Hp lanes)
    OUTp = _round_up(out_len, 128)  # lane-dense fc output store
    Bp = _round_up(B, 8)        # sublane-aligned batch

    # Largest time-block size that divides T (keeps index math static & exact).
    tb = max(d for d in range(1, min(T, time_block) + 1) if T % d == 0)
    grid = (T // tb,)

    # --- weight prep (zero padding keeps padded hidden units exactly zero) ---
    # NOTE: for repeated inference, pre-pack these once outside the call.
    wih0 = _pad_gate_cols(params["wih0"], H, Hp)                       # (D, 4Hp)
    whh0 = _pad_rows(_pad_gate_cols(params["whh0"], H, Hp), H, Hp)     # (Hp, 4Hp)
    b0 = _pad_gate_cols(params["b0"], H, Hp)                           # (1, 4Hp)
    wih1 = _pad_rows(_pad_gate_cols(params["wih1"], H, Hp), H, Hp)     # (Hp, 4Hp)
    whh1 = _pad_rows(_pad_gate_cols(params["whh1"], H, Hp), H, Hp)     # (Hp, 4Hp)
    w1 = jnp.concatenate([wih1, whh1], axis=0)                         # (2Hp, 4Hp)
    b1 = _pad_gate_cols(params["b1"], H, Hp)                           # (1, 4Hp)
    fcw = jnp.pad(params["fcw"], ((0, Hp - H), (0, OUTp - out_len)))   # (Hp, OUTp)
    fcb = jnp.pad(params["fcb"], ((0, 0), (0, OUTp - out_len)))        # (1, OUTp)

    # Time-major, batch-padded, flattened input: (T*Bp, D) so each grid step
    # grabs one contiguous (tb*Bp, D) slab.
    x_tm = jnp.transpose(x, (1, 0, 2))                    # (T, B, D)
    x_tm = jnp.pad(x_tm, ((0, 0), (0, Bp - B), (0, 0)))   # (T, Bp, D)
    x_2d = x_tm.reshape(T * Bp, D)

    full = lambda shape: pl.BlockSpec(shape, lambda i, s=len(shape): (0,) * s)

    out = pl.pallas_call(
        functools.partial(_lstm_kernel, tb=tb, bp=Bp, hp=Hp),
        out_shape=jax.ShapeDtypeStruct((Bp, OUTp), jnp.float32),
        grid_spec=pltpu.PrefetchScalarGridSpec(
            num_scalar_prefetch=0,
            grid=grid,
            in_specs=[
                pl.BlockSpec((tb * Bp, D), lambda i: (i, 0)),  # x time block
                full((D, 4 * Hp)),        # W_ih layer0 (transposed, gate-padded)
                full((Hp, 4 * Hp)),       # W_hh layer0
                full((1, 4 * Hp)),        # b_ih+b_hh layer0
                full((2 * Hp, 4 * Hp)),   # stacked [W_ih1; W_hh1]
                full((1, 4 * Hp)),        # b_ih+b_hh layer1
                full((Hp, OUTp)),         # fc weight (transposed, padded)
                full((1, OUTp)),          # fc bias (padded)
            ],
            out_specs=pl.BlockSpec((Bp, OUTp), lambda i: (0, 0)),
            scratch_shapes=[pltpu.VMEM((Bp, Hp), jnp.float32)] * 4,  # h0,c0,h1,c1
        ),
        compiler_params=pltpu.CompilerParams(
            dimension_semantics=("arbitrary",)),  # time recurrence is serial
    )(x_2d, wih0, whh0, b0, w1, b1, fcw, fcb)

    return out[:B, :out_len]


def init_params(key, input_dim, hidden_dim, output_len):
    """Deterministic init matching PyTorch shapes (uniform +-1/sqrt(H) like nn.LSTM)."""
    H = hidden_dim
    k = 1.0 / jnp.sqrt(jnp.float32(H))
    keys = jax.random.split(key, 12)
    u = lambda kk, shape, bound: jax.random.uniform(
        kk, shape, jnp.float32, minval=-bound, maxval=bound)

    # PyTorch stores W_ih_l0: (4H, D); we pass x @ W so keep (D, 4H) etc.
    wih0 = u(keys[0], (input_dim, 4 * H), k)
    whh0 = u(keys[1], (H, 4 * H), k)
    b0 = u(keys[2], (1, 4 * H), k) + u(keys[3], (1, 4 * H), k)  # b_ih + b_hh
    wih1 = u(keys[4], (H, 4 * H), k)
    whh1 = u(keys[5], (H, 4 * H), k)
    b1 = u(keys[6], (1, 4 * H), k) + u(keys[7], (1, 4 * H), k)
    kf = 1.0 / jnp.sqrt(jnp.float32(H))  # Linear fan_in = hidden_dim
    fcw = u(keys[8], (H, output_len), kf)
    fcb = u(keys[9], (1, output_len), kf)
    return dict(wih0=wih0, whh0=whh0, b0=b0,
                wih1=wih1, whh1=whh1, b1=b1,
                fcw=fcw, fcb=fcb)


def _reference_forward(x, params):
    """Pure-JAX reference of the same eval-mode forward, for a sanity check."""
    B, T, D = x.shape
    H = params["whh0"].shape[0]

    def cell(x_in, h, c, wih, whh, b):
        gates = x_in @ wih + h @ whh + b
        i = jax.nn.sigmoid(gates[:, 0 * H:1 * H])
        f = jax.nn.sigmoid(gates[:, 1 * H:2 * H])
        g = jnp.tanh(gates[:, 2 * H:3 * H])
        o = jax.nn.sigmoid(gates[:, 3 * H:4 * H])
        c_new = f * c + i * g
        return o * jnp.tanh(c_new), c_new

    h0 = c0 = h1 = c1 = jnp.zeros((B, H), jnp.float32)
    for t in range(T):
        h0, c0 = cell(x[:, t, :], h0, c0, params["wih0"], params["whh0"], params["b0"])
        h1, c1 = cell(h0, h1, c1, params["wih1"], params["whh1"], params["b1"])
    return h1 @ params["fcw"] + params["fcb"]


if __name__ == "__main__":
    B, T, D, H, OUT = 2, 8, 4, 32, 5

    key = jax.random.PRNGKey(0)
    kx, kp = jax.random.split(key)
    x = jax.random.normal(kx, (B, T, D), jnp.float32)
    params = init_params(kp, D, H, OUT)

    # time_block=4 -> grid=(2,): exercises h/c state carry across grid steps.
    pred = lstm_model_forward(x, params, time_block=4)
    pred = jax.block_until_ready(pred)

    ref = _reference_forward(x, params)
    assert pred.shape == (B, OUT)
    assert jnp.allclose(pred, ref, atol=1e-4, rtol=1e-4), "mismatch vs reference"

    print("KERNEL_OK")
</pallas_src>

<mosaic_0001>
module attributes {stable_mosaic.version = 11 : i64} {
  func.func @_lstm_kernel(%arg0: i32, %arg1: memref<32x4xf32, #tpu.memory_space<vmem>>, %arg2: memref<4x512xf32, #tpu.memory_space<vmem>>, %arg3: memref<128x512xf32, #tpu.memory_space<vmem>>, %arg4: memref<1x512xf32, #tpu.memory_space<vmem>>, %arg5: memref<256x512xf32, #tpu.memory_space<vmem>>, %arg6: memref<1x512xf32, #tpu.memory_space<vmem>>, %arg7: memref<128x128xf32, #tpu.memory_space<vmem>>, %arg8: memref<1x128xf32, #tpu.memory_space<vmem>>, %arg9: memref<8x128xf32, #tpu.memory_space<vmem>>, %arg10: memref<8x128xf32, #tpu.memory_space<vmem>>, %arg11: memref<8x128xf32, #tpu.memory_space<vmem>>, %arg12: memref<8x128xf32, #tpu.memory_space<vmem>>, %arg13: memref<8x128xf32, #tpu.memory_space<vmem>>) attributes {dimension_semantics = [#tpu.dimension_semantics<arbitrary>], iteration_bounds = array<i64: 2>, scalar_prefetch = 0 : i64, scratch_operands = 4 : i64, tpu.core_type = #tpu.core_type<tc>, window_params = [{transform_indices = @transform_0, window_bounds = array<i64: 32, 4>}, {pipeline_mode = #tpu.pipeline_mode<synchronous>, transform_indices = @transform_1, window_bounds = array<i64: 4, 512>}, {pipeline_mode = #tpu.pipeline_mode<synchronous>, transform_indices = @transform_2, window_bounds = array<i64: 128, 512>}, {pipeline_mode = #tpu.pipeline_mode<synchronous>, transform_indices = @transform_3, window_bounds = array<i64: 1, 512>}, {pipeline_mode = #tpu.pipeline_mode<synchronous>, transform_indices = @transform_4, window_bounds = array<i64: 256, 512>}, {pipeline_mode = #tpu.pipeline_mode<synchronous>, transform_indices = @transform_5, window_bounds = array<i64: 1, 512>}, {pipeline_mode = #tpu.pipeline_mode<synchronous>, transform_indices = @transform_6, window_bounds = array<i64: 128, 128>}, {pipeline_mode = #tpu.pipeline_mode<synchronous>, transform_indices = @transform_7, window_bounds = array<i64: 1, 128>}, {pipeline_mode = #tpu.pipeline_mode<synchronous>, transform_indices = @transform_8, window_bounds = array<i64: 8, 128>}]} {
    %c0_i32 = arith.constant 0 : i32
    %0 = arith.cmpi eq, %arg0, %c0_i32 : i32
    %1 = arith.extui %0 : i1 to i32
    %c0_i32_0 = arith.constant 0 : i32
    %2 = arith.cmpi ne, %1, %c0_i32_0 : i32
    scf.if %2 {
      %cst_61 = arith.constant 0.000000e+00 : f32
      %257 = vector.broadcast %cst_61 : f32 to vector<8x128xf32>
      %c0_62 = arith.constant 0 : index
      %c0_63 = arith.constant 0 : index
      %258 = vector.load %arg10[%c0_62, %c0_63] : memref<8x128xf32, #tpu.memory_space<vmem>>, vector<8x128xf32>
      tpu.vector_store %arg10[%c0_62, %c0_63], %257 {strides = array<i32>} : memref<8x128xf32, #tpu.memory_space<vmem>>, vector<8x128xf32>,
      %cst_64 = arith.constant 0.000000e+00 : f32
      %259 = vector.broadcast %cst_64 : f32 to vector<8x128xf32>
      %c0_65 = arith.constant 0 : index
      %c0_66 = arith.constant 0 : index
      %260 = vector.load %arg11[%c0_65, %c0_66] : memref<8x128xf32, #tpu.memory_space<vmem>>, vector<8x128xf32>
      tpu.vector_store %arg11[%c0_65, %c0_66], %259 {strides = array<i32>} : memref<8x128xf32, #tpu.memory_space<vmem>>, vector<8x128xf32>,
      %cst_67 = arith.constant 0.000000e+00 : f32
      %261 = vector.broadcast %cst_67 : f32 to vector<8x128xf32>
      %c0_68 = arith.constant 0 : index
      %c0_69 = arith.constant 0 : index
      %262 = vector.load %arg12[%c0_68, %c0_69] : memref<8x128xf32, #tpu.memory_space<vmem>>, vector<8x128xf32>
      tpu.vector_store %arg12[%c0_68, %c0_69], %261 {strides = array<i32>} : memref<8x128xf32, #tpu.memory_space<vmem>>, vector<8x128xf32>,
      %cst_70 = arith.constant 0.000000e+00 : f32
      %263 = vector.broadcast %cst_70 : f32 to vector<8x128xf32>
      %c0_71 = arith.constant 0 : index
      %c0_72 = arith.constant 0 : index
      %264 = vector.load %arg13[%c0_71, %c0_72] : memref<8x128xf32, #tpu.memory_space<vmem>>, vector<8x128xf32>
      tpu.vector_store %arg13[%c0_71, %c0_72], %263 {strides = array<i32>} : memref<8x128xf32, #tpu.memory_space<vmem>>, vector<8x128xf32>,
    } else {
    }
    %c0 = arith.constant 0 : index
    %c0_1 = arith.constant 0 : index
    %3 = vector.load %arg1[%c0, %c0_1] : memref<32x4xf32, #tpu.memory_space<vmem>>, vector<32x4xf32>
    %c0_2 = arith.constant 0 : index
    %c0_3 = arith.constant 0 : index
    %4 = vector.load %arg2[%c0_2, %c0_3] : memref<4x512xf32, #tpu.memory_space<vmem>>, vector<4x512xf32>
    %cst = arith.constant dense<0.000000e+00> : vector<32x512xf32>
    %5 = tpu.matmul %3, %4, %cst {dimension_numbers = #tpu.dot_dimension_numbers<[1], [0], [0], [1], [0, 0, 1, 1], [], []>} : vector<32x4xf32>, vector<4x512xf32>, vector<32x512xf32> -> vector<32x512xf32>
    %c0_4 = arith.constant 0 : index
    %c0_5 = arith.constant 0 : index
    %6 = vector.load %arg3[%c0_4, %c0_5] : memref<128x512xf32, #tpu.memory_space<vmem>>, vector<128x512xf32>
    %c0_6 = arith.constant 0 : index
    %c0_7 = arith.constant 0 : index
    %7 = vector.load %arg4[%c0_6, %c0_7] : memref<1x512xf32, #tpu.memory_space<vmem>>, vector<1x512xf32>
    %c0_8 = arith.constant 0 : index
    %c0_9 = arith.constant 0 : index
    %8 = vector.load %arg5[%c0_8, %c0_9] : memref<256x512xf32, #tpu.memory_space<vmem>>, vector<256x512xf32>
    %c0_10 = arith.constant 0 : index
    %c0_11 = arith.constant 0 : index
    %9 = vector.load %arg6[%c0_10, %c0_11] : memref<1x512xf32, #tpu.memory_space<vmem>>, vector<1x512xf32>
    %c0_12 = arith.constant 0 : index
    %c0_13 = arith.constant 0 : index
    %10 = vector.load %arg10[%c0_12, %c0_13] : memref<8x128xf32, #tpu.memory_space<vmem>>, vector<8x128xf32>
    %c0_14 = arith.constant 0 : index
    %c0_15 = arith.constant 0 : index
    %11 = vector.load %arg11[%c0_14, %c0_15] : memref<8x128xf32, #tpu.memory_space<vmem>>, vector<8x128xf32>
    %c0_16 = arith.constant 0 : index
    %c0_17 = arith.constant 0 : index
    %12 = vector.load %arg12[%c0_16, %c0_17] : memref<8x128xf32, #tpu.memory_space<vmem>>, vector<8x128xf32>
    %c0_18 = arith.constant 0 : index
    %c0_19 = arith.constant 0 : index
    %13 = vector.load %arg13[%c0_18, %c0_19] : memref<8x128xf32, #tpu.memory_space<vmem>>, vector<8x128xf32>
    %14 = vector.extract_strided_slice %5 {offsets = [0, 0], sizes = [8, 512], strides = [1, 1]} : vector<32x512xf32> to vector<8x512xf32>
    %cst_20 = arith.constant dense<0.000000e+00> : vector<8x512xf32>
    %15 = tpu.matmul %10, %6, %cst_20 {dimension_numbers = #tpu.dot_dimension_numbers<[1], [0], [0], [1], [0, 0, 1, 1], [], []>} : vector<8x128xf32>, vector<128x512xf32>, vector<8x512xf32> -> vector<8x512xf32>
    %16 = arith.addf %14, %15 : vector<8x512xf32>
    %17 = vector.broadcast %7 : vector<1x512xf32> to vector<8x512xf32>
    %18 = arith.addf %16, %17 : vector<8x512xf32>
    %19 = vector.extract_strided_slice %18 {offsets = [0, 0], sizes = [8, 128], strides = [1, 1]} : vector<8x512xf32> to vector<8x128xf32>
    %20 = arith.negf %19 : vector<8x128xf32>
    %21 = math.exp %20 : vector<8x128xf32>
    %cst_21 = arith.constant 1.000000e+00 : f32
    %22 = vector.broadcast %cst_21 : f32 to vector<8x128xf32>
    %23 = arith.addf %22, %21 : vector<8x128xf32>
    %24 = arith.divf %22, %23 : vector<8x128xf32>
    %25 = vector.extract_strided_slice %18 {offsets = [0, 128], sizes = [8, 128], strides = [1, 1]} : vector<8x512xf32> to vector<8x128xf32>
    %26 = arith.negf %25 : vector<8x128xf32>
    %27 = math.exp %26 : vector<8x128xf32>
    %cst_22 = arith.constant 1.000000e+00 : f32
    %28 = vector.broadcast %cst_22 : f32 to vector<8x128xf32>
    %29 = arith.addf %28, %27 : vector<8x128xf32>
    %30 = arith.divf %28, %29 : vector<8x128xf32>
    %31 = vector.extract_strided_slice %18 {offsets = [0, 256], sizes = [8, 128], strides = [1, 1]} : vector<8x512xf32> to vector<8x128xf32>
    %32 = math.tanh %31 : vector<8x128xf32>
    %33 = vector.extract_strided_slice %18 {offsets = [0, 384], sizes = [8, 128], strides = [1, 1]} : vector<8x512xf32> to vector<8x128xf32>
    %34 = arith.negf %33 : vector<8x128xf32>
    %35 = math.exp %34 : vector<8x128xf32>
    %cst_23 = arith.constant 1.000000e+00 : f32
    %36 = vector.broadcast %cst_23 : f32 to vector<8x128xf32>
    %37 = arith.addf %36, %35 : vector<8x128xf32>
    %38 = arith.divf %36, %37 : vector<8x128xf32>
    %39 = arith.mulf %30, %11 : vector<8x128xf32>
    %40 = arith.mulf %24, %32 : vector<8x128xf32>
    %41 = arith.addf %39, %40 : vector<8x128xf32>
    %42 = math.tanh %41 : vector<8x128xf32>
    %43 = arith.mulf %38, %42 : vector<8x128xf32>
    %44 = tpu.concatenate %43, %12 in 1 : vector<8x128xf32>, vector<8x128xf32> -> vector<8x256xf32>
    %cst_24 = arith.constant dense<0.000000e+00> : vector<8x512xf32>
    %45 = tpu.matmul %44, %8, %cst_24 {dimension_numbers = #tpu.dot_dimension_numbers<[1], [0], [0], [1], [0, 0, 1, 1], [], []>} : vector<8x256xf32>, vector<256x512xf32>, vector<8x512xf32> -> vector<8x512xf32>
    %46 = vector.broadcast %9 : vector<1x512xf32> to vector<8x512xf32>
    %47 = arith.addf %45, %46 : vector<8x512xf32>
    %48 = vector.extract_strided_slice %47 {offsets = [0, 0], sizes = [8, 128], strides = [1, 1]} : vector<8x512xf32> to vector<8x128xf32>
    %49 = arith.negf %48 : vector<8x128xf32>
    %50 = math.exp %49 : vector<8x128xf32>
    %cst_25 = arith.constant 1.000000e+00 : f32
    %51 = vector.broadcast %cst_25 : f32 to vector<8x128xf32>
    %52 = arith.addf %51, %50 : vector<8x128xf32>
    %53 = arith.divf %51, %52 : vector<8x128xf32>
    %54 = vector.extract_strided_slice %47 {offsets = [0, 128], sizes = [8, 128], strides = [1, 1]} : vector<8x512xf32> to vector<8x128xf32>
    %55 = arith.negf %54 : vector<8x128xf32>
    %56 = math.exp %55 : vector<8x128xf32>
    %cst_26 = arith.constant 1.000000e+00 : f32
    %57 = vector.broadcast %cst_26 : f32 to vector<8x128xf32>
    %58 = arith.addf %57, %56 : vector<8x128xf32>
    %59 = arith.divf %57, %58 : vector<8x128xf32>
    %60 = vector.extract_strided_slice %47 {offsets = [0, 256], sizes = [8, 128], strides = [1, 1]} : vector<8x512xf32> to vector<8x128xf32>
    %61 = math.tanh %60 : vector<8x128xf32>
    %62 = vector.extract_strided_slice %47 {offsets = [0, 384], sizes = [8, 128], strides = [1, 1]} : vector<8x512xf32> to vector<8x128xf32>
    %63 = arith.negf %62 : vector<8x128xf32>
    %64 = math.exp %63 : vector<8x128xf32>
    %cst_27 = arith.constant 1.000000e+00 : f32
    %65 = vector.broadcast %cst_27 : f32 to vector<8x128xf32>
    %66 = arith.addf %65, %64 : vector<8x128xf32>
    %67 = arith.divf %65, %66 : vector<8x128xf32>
    %68 = arith.mulf %59, %13 : vector<8x128xf32>
    %69 = arith.mulf %53, %61 : vector<8x128xf32>
    %70 = arith.addf %68, %69 : vector<8x128xf32>
    %71 = math.tanh %70 : vector<8x128xf32>
    %72 = arith.mulf %67, %71 : vector<8x128xf32>
    %73 = vector.extract_strided_slice %5 {offsets = [8, 0], sizes = [8, 512], strides = [1, 1]} : vector<32x512xf32> to vector<8x512xf32>
    %cst_28 = arith.constant dense<0.000000e+00> : vector<8x512xf32>
    %74 = tpu.matmul %43, %6, %cst_28 {dimension_numbers = #tpu.dot_dimension_numbers<[1], [0], [0], [1], [0, 0, 1, 1], [], []>} : vector<8x128xf32>, vector<128x512xf32>, vector<8x512xf32> -> vector<8x512xf32>
    %75 = arith.addf %73, %74 : vector<8x512xf32>
    %76 = vector.broadcast %7 : vector<1x512xf32> to vector<8x512xf32>
    %77 = arith.addf %75, %76 : vector<8x512xf32>
    %78 = vector.extract_strided_slice %77 {offsets = [0, 0], sizes = [8, 128], strides = [1, 1]} : vector<8x512xf32> to vector<8x128xf32>
    %79 = arith.negf %78 : vector<8x128xf32>
    %80 = math.exp %79 : vector<8x128xf32>
    %cst_29 = arith.constant 1.000000e+00 : f32
    %81 = vector.broadcast %cst_29 : f32 to vector<8x128xf32>
    %82 = arith.addf %81, %80 : vector<8x128xf32>
    %83 = arith.divf %81, %82 : vector<8x128xf32>
    %84 = vector.extract_strided_slice %77 {offsets = [0, 128], sizes = [8, 128], strides = [1, 1]} : vector<8x512xf32> to vector<8x128xf32>
    %85 = arith.negf %84 : vector<8x128xf32>
    %86 = math.exp %85 : vector<8x128xf32>
    %cst_30 = arith.constant 1.000000e+00 : f32
    %87 = vector.broadcast %cst_30 : f32 to vector<8x128xf32>
    %88 = arith.addf %87, %86 : vector<8x128xf32>
    %89 = arith.divf %87, %88 : vector<8x128xf32>
    %90 = vector.extract_strided_slice %77 {offsets = [0, 256], sizes = [8, 128], strides = [1, 1]} : vector<8x512xf32> to vector<8x128xf32>
    %91 = math.tanh %90 : vector<8x128xf32>
    %92 = vector.extract_strided_slice %77 {offsets = [0, 384], sizes = [8, 128], strides = [1, 1]} : vector<8x512xf32> to vector<8x128xf32>
    %93 = arith.negf %92 : vector<8x128xf32>
    %94 = math.exp %93 : vector<8x128xf32>
    %cst_31 = arith.constant 1.000000e+00 : f32
    %95 = vector.broadcast %cst_31 : f32 to vector<8x128xf32>
    %96 = arith.addf %95, %94 : vector<8x128xf32>
    %97 = arith.divf %95, %96 : vector<8x128xf32>
    %98 = arith.mulf %89, %41 : vector<8x128xf32>
    %99 = arith.mulf %83, %91 : vector<8x128xf32>
    %100 = arith.addf %98, %99 : vector<8x128xf32>
    %101 = math.tanh %100 : vector<8x128xf32>
    %102 = arith.mulf %97, %101 : vector<8x128xf32>
    %103 = tpu.concatenate %102, %72 in 1 : vector<8x128xf32>, vector<8x128xf32> -> vector<8x256xf32>
    %cst_32 = arith.constant dense<0.000000e+00> : vector<8x512xf32>
    %104 = tpu.matmul %103, %8, %cst_32 {dimension_numbers = #tpu.dot_dimension_numbers<[1], [0], [0], [1], [0, 0, 1, 1], [], []>} : vector<8x256xf32>, vector<256x512xf32>, vector<8x512xf32> -> vector<8x512xf32>
    %105 = vector.broadcast %9 : vector<1x512xf32> to vector<8x512xf32>
    %106 = arith.addf %104, %105 : vector<8x512xf32>
    %107 = vector.extract_strided_slice %106 {offsets = [0, 0], sizes = [8, 128], strides = [1, 1]} : vector<8x512xf32> to vector<8x128xf32>
    %108 = arith.negf %107 : vector<8x128xf32>
    %109 = math.exp %108 : vector<8x128xf32>
    %cst_33 = arith.constant 1.000000e+00 : f32
    %110 = vector.broadcast %cst_33 : f32 to vector<8x128xf32>
    %111 = arith.addf %110, %109 : vector<8x128xf32>
    %112 = arith.divf %110, %111 : vector<8x128xf32>
    %113 = vector.extract_strided_slice %106 {offsets = [0, 128], sizes = [8, 128], strides = [1, 1]} : vector<8x512xf32> to vector<8x128xf32>
    %114 = arith.negf %113 : vector<8x128xf32>
    %115 = math.exp %114 : vector<8x128xf32>
    %cst_34 = arith.constant 1.000000e+00 : f32
    %116 = vector.broadcast %cst_34 : f32 to vector<8x128xf32>
    %117 = arith.addf %116, %115 : vector<8x128xf32>
    %118 = arith.divf %116, %117 : vector<8x128xf32>
    %119 = vector.extract_strided_slice %106 {offsets = [0, 256], sizes = [8, 128], strides = [1, 1]} : vector<8x512xf32> to vector<8x128xf32>
    %120 = math.tanh %119 : vector<8x128xf32>
    %121 = vector.extract_strided_slice %106 {offsets = [0, 384], sizes = [8, 128], strides = [1, 1]} : vector<8x512xf32> to vector<8x128xf32>
    %122 = arith.negf %121 : vector<8x128xf32>
    %123 = math.exp %122 : vector<8x128xf32>
    %cst_35 = arith.constant 1.000000e+00 : f32
    %124 = vector.broadcast %cst_35 : f32 to vector<8x128xf32>
    %125 = arith.addf %124, %123 : vector<8x128xf32>
    %126 = arith.divf %124, %125 : vector<8x128xf32>
    %127 = arith.mulf %118, %70 : vector<8x128xf32>
    %128 = arith.mulf %112, %120 : vector<8x128xf32>
    %129 = arith.addf %127, %128 : vector<8x128xf32>
    %130 = math.tanh %129 : vector<8x128xf32>
    %131 = arith.mulf %126, %130 : vector<8x128xf32>
    %132 = vector.extract_strided_slice %5 {offsets = [16, 0], sizes = [8, 512], strides = [1, 1]} : vector<32x512xf32> to vector<8x512xf32>
    %cst_36 = arith.constant dense<0.000000e+00> : vector<8x512xf32>
    %133 = tpu.matmul %102, %6, %cst_36 {dimension_numbers = #tpu.dot_dimension_numbers<[1], [0], [0], [1], [0, 0, 1, 1], [], []>} : vector<8x128xf32>, vector<128x512xf32>, vector<8x512xf32> -> vector<8x512xf32>
    %134 = arith.addf %132, %133 : vector<8x512xf32>
    %135 = vector.broadcast %7 : vector<1x512xf32> to vector<8x512xf32>
    %136 = arith.addf %134, %135 : vector<8x512xf32>
    %137 = vector.extract_strided_slice %136 {offsets = [0, 0], sizes = [8, 128], strides = [1, 1]} : vector<8x512xf32> to vector<8x128xf32>
    %138 = arith.negf %137 : vector<8x128xf32>
    %139 = math.exp %138 : vector<8x128xf32>
    %cst_37 = arith.constant 1.000000e+00 : f32
    %140 = vector.broadcast %cst_37 : f32 to vector<8x128xf32>
    %141 = arith.addf %140, %139 : vector<8x128xf32>
    %142 = arith.divf %140, %141 : vector<8x128xf32>
    %143 = vector.extract_strided_slice %136 {offsets = [0, 128], sizes = [8, 128], strides = [1, 1]} : vector<8x512xf32> to vector<8x128xf32>
    %144 = arith.negf %143 : vector<8x128xf32>
    %145 = math.exp %144 : vector<8x128xf32>
    %cst_38 = arith.constant 1.000000e+00 : f32
    %146 = vector.broadcast %cst_38 : f32 to vector<8x128xf32>
    %147 = arith.addf %146, %145 : vector<8x128xf32>
    %148 = arith.divf %146, %147 : vector<8x128xf32>
    %149 = vector.extract_strided_slice %136 {offsets = [0, 256], sizes = [8, 128], strides = [1, 1]} : vector<8x512xf32> to vector<8x128xf32>
    %150 = math.tanh %149 : vector<8x128xf32>
    %151 = vector.extract_strided_slice %136 {offsets = [0, 384], sizes = [8, 128], strides = [1, 1]} : vector<8x512xf32> to vector<8x128xf32>
    %152 = arith.negf %151 : vector<8x128xf32>
    %153 = math.exp %152 : vector<8x128xf32>
    %cst_39 = arith.constant 1.000000e+00 : f32
    %154 = vector.broadcast %cst_39 : f32 to vector<8x128xf32>
    %155 = arith.addf %154, %153 : vector<8x128xf32>
    %156 = arith.divf %154, %155 : vector<8x128xf32>
    %157 = arith.mulf %148, %100 : vector<8x128xf32>
    %158 = arith.mulf %142, %150 : vector<8x128xf32>
    %159 = arith.addf %157, %158 : vector<8x128xf32>
    %160 = math.tanh %159 : vector<8x128xf32>
    %161 = arith.mulf %156, %160 : vector<8x128xf32>
    %162 = tpu.concatenate %161, %131 in 1 : vector<8x128xf32>, vector<8x128xf32> -> vector<8x256xf32>
    %cst_40 = arith.constant dense<0.000000e+00> : vector<8x512xf32>
    %163 = tpu.matmul %162, %8, %cst_40 {dimension_numbers = #tpu.dot_dimension_numbers<[1], [0], [0], [1], [0, 0, 1, 1], [], []>} : vector<8x256xf32>, vector<256x512xf32>, vector<8x512xf32> -> vector<8x512xf32>
    %164 = vector.broadcast %9 : vector<1x512xf32> to vector<8x512xf32>
    %165 = arith.addf %163, %164 : vector<8x512xf32>
    %166 = vector.extract_strided_slice %165 {offsets = [0, 0], sizes = [8, 128], strides = [1, 1]} : vector<8x512xf32> to vector<8x128xf32>
    %167 = arith.negf %166 : vector<8x128xf32>
    %168 = math.exp %167 : vector<8x128xf32>
    %cst_41 = arith.constant 1.000000e+00 : f32
    %169 = vector.broadcast %cst_41 : f32 to vector<8x128xf32>
    %170 = arith.addf %169, %168 : vector<8x128xf32>
    %171 = arith.divf %169, %170 : vector<8x128xf32>
    %172 = vector.extract_strided_slice %165 {offsets = [0, 128], sizes = [8, 128], strides = [1, 1]} : vector<8x512xf32> to vector<8x128xf32>
    %173 = arith.negf %172 : vector<8x128xf32>
    %174 = math.exp %173 : vector<8x128xf32>
    %cst_42 = arith.constant 1.000000e+00 : f32
    %175 = vector.broadcast %cst_42 : f32 to vector<8x128xf32>
    %176 = arith.addf %175, %174 : vector<8x128xf32>
    %177 = arith.divf %175, %176 : vector<8x128xf32>
    %178 = vector.extract_strided_slice %165 {offsets = [0, 256], sizes = [8, 128], strides = [1, 1]} : vector<8x512xf32> to vector<8x128xf32>
    %179 = math.tanh %178 : vector<8x128xf32>
    %180 = vector.extract_strided_slice %165 {offsets = [0, 384], sizes = [8, 128], strides = [1, 1]} : vector<8x512xf32> to vector<8x128xf32>
    %181 = arith.negf %180 : vector<8x128xf32>
    %182 = math.exp %181 : vector<8x128xf32>
    %cst_43 = arith.constant 1.000000e+00 : f32
    %183 = vector.broadcast %cst_43 : f32 to vector<8x128xf32>
    %184 = arith.addf %183, %182 : vector<8x128xf32>
    %185 = arith.divf %183, %184 : vector<8x128xf32>
    %186 = arith.mulf %177, %129 : vector<8x128xf32>
    %187 = arith.mulf %171, %179 : vector<8x128xf32>
    %188 = arith.addf %186, %187 : vector<8x128xf32>
    %189 = math.tanh %188 : vector<8x128xf32>
    %190 = arith.mulf %185, %189 : vector<8x128xf32>
    %191 = vector.extract_strided_slice %5 {offsets = [24, 0], sizes = [8, 512], strides = [1, 1]} : vector<32x512xf32> to vector<8x512xf32>
    %cst_44 = arith.constant dense<0.000000e+00> : vector<8x512xf32>
    %192 = tpu.matmul %161, %6, %cst_44 {dimension_numbers = #tpu.dot_dimension_numbers<[1], [0], [0], [1], [0, 0, 1, 1], [], []>} : vector<8x128xf32>, vector<128x512xf32>, vector<8x512xf32> -> vector<8x512xf32>
    %193 = arith.addf %191, %192 : vector<8x512xf32>
    %194 = vector.broadcast %7 : vector<1x512xf32> to vector<8x512xf32>
    %195 = arith.addf %193, %194 : vector<8x512xf32>
    %196 = vector.extract_strided_slice %195 {offsets = [0, 0], sizes = [8, 128], strides = [1, 1]} : vector<8x512xf32> to vector<8x128xf32>
    %197 = arith.negf %196 : vector<8x128xf32>
    %198 = math.exp %197 : vector<8x128xf32>
    %cst_45 = arith.constant 1.000000e+00 : f32
    %199 = vector.broadcast %cst_45 : f32 to vector<8x128xf32>
    %200 = arith.addf %199, %198 : vector<8x128xf32>
    %201 = arith.divf %199, %200 : vector<8x128xf32>
    %202 = vector.extract_strided_slice %195 {offsets = [0, 128], sizes = [8, 128], strides = [1, 1]} : vector<8x512xf32> to vector<8x128xf32>
    %203 = arith.negf %202 : vector<8x128xf32>
    %204 = math.exp %203 : vector<8x128xf32>
    %cst_46 = arith.constant 1.000000e+00 : f32
    %205 = vector.broadcast %cst_46 : f32 to vector<8x128xf32>
    %206 = arith.addf %205, %204 : vector<8x128xf32>
    %207 = arith.divf %205, %206 : vector<8x128xf32>
    %208 = vector.extract_strided_slice %195 {offsets = [0, 256], sizes = [8, 128], strides = [1, 1]} : vector<8x512xf32> to vector<8x128xf32>
    %209 = math.tanh %208 : vector<8x128xf32>
    %210 = vector.extract_strided_slice %195 {offsets = [0, 384], sizes = [8, 128], strides = [1, 1]} : vector<8x512xf32> to vector<8x128xf32>
    %211 = arith.negf %210 : vector<8x128xf32>
    %212 = math.exp %211 : vector<8x128xf32>
    %cst_47 = arith.constant 1.000000e+00 : f32
    %213 = vector.broadcast %cst_47 : f32 to vector<8x128xf32>
    %214 = arith.addf %213, %212 : vector<8x128xf32>
    %215 = arith.divf %213, %214 : vector<8x128xf32>
    %216 = arith.mulf %207, %159 : vector<8x128xf32>
    %217 = arith.mulf %201, %209 : vector<8x128xf32>
    %218 = arith.addf %216, %217 : vector<8x128xf32>
    %219 = math.tanh %218 : vector<8x128xf32>
    %220 = arith.mulf %215, %219 : vector<8x128xf32>
    %221 = tpu.concatenate %220, %190 in 1 : vector<8x128xf32>, vector<8x128xf32> -> vector<8x256xf32>
    %cst_48 = arith.constant dense<0.000000e+00> : vector<8x512xf32>
    %222 = tpu.matmul %221, %8, %cst_48 {dimension_numbers = #tpu.dot_dimension_numbers<[1], [0], [0], [1], [0, 0, 1, 1], [], []>} : vector<8x256xf32>, vector<256x512xf32>, vector<8x512xf32> -> vector<8x512xf32>
    %223 = vector.broadcast %9 : vector<1x512xf32> to vector<8x512xf32>
    %224 = arith.addf %222, %223 : vector<8x512xf32>
    %225 = vector.extract_strided_slice %224 {offsets = [0, 0], sizes = [8, 128], strides = [1, 1]} : vector<8x512xf32> to vector<8x128xf32>
    %226 = arith.negf %225 : vector<8x128xf32>
    %227 = math.exp %226 : vector<8x128xf32>
    %cst_49 = arith.constant 1.000000e+00 : f32
    %228 = vector.broadcast %cst_49 : f32 to vector<8x128xf32>
    %229 = arith.addf %228, %227 : vector<8x128xf32>
    %230 = arith.divf %228, %229 : vector<8x128xf32>
    %231 = vector.extract_strided_slice %224 {offsets = [0, 128], sizes = [8, 128], strides = [1, 1]} : vector<8x512xf32> to vector<8x128xf32>
    %232 = arith.negf %231 : vector<8x128xf32>
    %233 = math.exp %232 : vector<8x128xf32>
    %cst_50 = arith.constant 1.000000e+00 : f32
    %234 = vector.broadcast %cst_50 : f32 to vector<8x128xf32>
    %235 = arith.addf %234, %233 : vector<8x128xf32>
    %236 = arith.divf %234, %235 : vector<8x128xf32>
    %237 = vector.extract_strided_slice %224 {offsets = [0, 256], sizes = [8, 128], strides = [1, 1]} : vector<8x512xf32> to vector<8x128xf32>
    %238 = math.tanh %237 : vector<8x128xf32>
    %239 = vector.extract_strided_slice %224 {offsets = [0, 384], sizes = [8, 128], strides = [1, 1]} : vector<8x512xf32> to vector<8x128xf32>
    %240 = arith.negf %239 : vector<8x128xf32>
    %241 = math.exp %240 : vector<8x128xf32>
    %cst_51 = arith.constant 1.000000e+00 : f32
    %242 = vector.broadcast %cst_51 : f32 to vector<8x128xf32>
    %243 = arith.addf %242, %241 : vector<8x128xf32>
    %244 = arith.divf %242, %243 : vector<8x128xf32>
    %245 = arith.mulf %236, %188 : vector<8x128xf32>
    %246 = arith.mulf %230, %238 : vector<8x128xf32>
    %247 = arith.addf %245, %246 : vector<8x128xf32>
    %248 = math.tanh %247 : vector<8x128xf32>
    %249 = arith.mulf %244, %248 : vector<8x128xf32>
    %c0_52 = arith.constant 0 : index
    %c0_53 = arith.constant 0 : index
    %250 = vector.load %arg10[%c0_52, %c0_53] : memref<8x128xf32, #tpu.memory_space<vmem>>, vector<8x128xf32>
    tpu.vector_store %arg10[%c0_52, %c0_53], %220 {strides = array<i32>} : memref<8x128xf32, #tpu.memory_space<vmem>>, vector<8x128xf32>,
    %c0_54 = arith.constant 0 : index
    %c0_55 = arith.constant 0 : index
    %251 = vector.load %arg11[%c0_54, %c0_55] : memref<8x128xf32, #tpu.memory_space<vmem>>, vector<8x128xf32>
    tpu.vector_store %arg11[%c0_54, %c0_55], %218 {strides = array<i32>} : memref<8x128xf32, #tpu.memory_space<vmem>>, vector<8x128xf32>,
    %c0_56 = arith.constant 0 : index
    %c0_57 = arith.constant 0 : index
    %252 = vector.load %arg12[%c0_56, %c0_57] : memref<8x128xf32, #tpu.memory_space<vmem>>, vector<8x128xf32>
    tpu.vector_store %arg12[%c0_56, %c0_57], %249 {strides = array<i32>} : memref<8x128xf32, #tpu.memory_space<vmem>>, vector<8x128xf32>,
    %c0_58 = arith.constant 0 : index
    %c0_59 = arith.constant 0 : index
    %253 = vector.load %arg13[%c0_58, %c0_59] : memref<8x128xf32, #tpu.memory_space<vmem>>, vector<8x128xf32>
    tpu.vector_store %arg13[%c0_58, %c0_59], %247 {strides = array<i32>} : memref<8x128xf32, #tpu.memory_space<vmem>>, vector<8x128xf32>,
    %c1_i32 = arith.constant 1 : i32
    %254 = arith.cmpi eq, %arg0, %c1_i32 : i32
    %255 = arith.extui %254 : i1 to i32
    %c0_i32_60 = arith.constant 0 : i32
    %256 = arith.cmpi ne, %255, %c0_i32_60 : i32
    scf.if %256 {
      %c0_61 = arith.constant 0 : index
      %c0_62 = arith.constant 0 : index
      %257 = vector.load %arg7[%c0_61, %c0_62] : memref<128x128xf32, #tpu.memory_space<vmem>>, vector<128x128xf32>
      %cst_63 = arith.constant dense<0.000000e+00> : vector<8x128xf32>
      %258 = tpu.matmul %249, %257, %cst_63 {dimension_numbers = #tpu.dot_dimension_numbers<[1], [0], [0], [1], [0, 0, 1, 1], [], []>} : vector<8x128xf32>, vector<128x128xf32>, vector<8x128xf32> -> vector<8x128xf32>
      %c0_64 = arith.constant 0 : index
      %c0_65 = arith.constant 0 : index
      %259 = vector.load %arg8[%c0_64, %c0_65] : memref<1x128xf32, #tpu.memory_space<vmem>>, vector<1x128xf32>
      %260 = vector.broadcast %259 : vector<1x128xf32> to vector<8x128xf32>
      %261 = arith.addf %258, %260 : vector<8x128xf32>
      %c0_66 = arith.constant 0 : index
      %c0_67 = arith.constant 0 : index
      %262 = vector.load %arg9[%c0_66, %c0_67] : memref<8x128xf32, #tpu.memory_space<vmem>>, vector<8x128xf32>
      tpu.vector_store %arg9[%c0_66, %c0_67], %261 {strides = array<i32>} : memref<8x128xf32, #tpu.memory_space<vmem>>, vector<8x128xf32>,
    } else {
    }
    return
  }
  func.func @transform_0(%arg0: i32) -> (i32, i32) {
    %c0_i32 = arith.constant 0 : i32
    %c0_i32_0 = arith.constant 0 : i32
    return %arg0, %c0_i32 : i32, i32
  }
  func.func @transform_1(%arg0: i32) -> (i32, i32) {
    %c0_i32 = arith.constant 0 : i32
    %c0_i32_0 = arith.constant 0 : i32
    %c0_i32_1 = arith.constant 0 : i32
    return %c0_i32, %c0_i32_0 : i32, i32
  }
  func.func @transform_2(%arg0: i32) -> (i32, i32) {
    %c0_i32 = arith.constant 0 : i32
    %c0_i32_0 = arith.constant 0 : i32
    %c0_i32_1 = arith.constant 0 : i32
    return %c0_i32, %c0_i32_0 : i32, i32
  }
  func.func @transform_3(%arg0: i32) -> (i32, i32) {
    %c0_i32 = arith.constant 0 : i32
    %c0_i32_0 = arith.constant 0 : i32
    %c0_i32_1 = arith.constant 0 : i32
    return %c0_i32, %c0_i32_0 : i32, i32
  }
  func.func @transform_4(%arg0: i32) -> (i32, i32) {
    %c0_i32 = arith.constant 0 : i32
    %c0_i32_0 = arith.constant 0 : i32
    %c0_i32_1 = arith.constant 0 : i32
    return %c0_i32, %c0_i32_0 : i32, i32
  }
  func.func @transform_5(%arg0: i32) -> (i32, i32) {
    %c0_i32 = arith.constant 0 : i32
    %c0_i32_0 = arith.constant 0 : i32
    %c0_i32_1 = arith.constant 0 : i32
    return %c0_i32, %c0_i32_0 : i32, i32
  }
  func.func @transform_6(%arg0: i32) -> (i32, i32) {
    %c0_i32 = arith.constant 0 : i32
    %c0_i32_0 = arith.constant 0 : i32
    %c0_i32_1 = arith.constant 0 : i32
    return %c0_i32, %c0_i32_0 : i32, i32
  }
  func.func @transform_7(%arg0: i32) -> (i32, i32) {
    %c0_i32 = arith.constant 0 : i32
    %c0_i32_0 = arith.constant 0 : i32
    %c0_i32_1 = arith.constant 0 : i32
    return %c0_i32, %c0_i32_0 : i32, i32
  }
  func.func @transform_8(%arg0: i32) -> (i32, i32) {
    %c0_i32 = arith.constant 0 : i32
    %c0_i32_0 = arith.constant 0 : i32
    %c0_i32_1 = arith.constant 0 : i32
    return %c0_i32, %c0_i32_0 : i32, i32
  }
}

</mosaic_0001>

<llo_original>
// kernel: tpu_custom_call.1
$region0: #{tpu_custom_call.1}
  #allocation0 [shape = 'u32[]', space=smem, size = 0x4, offset = 0x4, fixed_abs, tag = 'smem constant byte address 0x4 - core index']
  #allocation1 [shape = 'u32[144,128]{1,0:T(1,128)}', space=vmem, size = 0x12000, scoped, tag = 'internal scratch']
  #allocation2 [shape = 'f32[8,128]{1,0:T(8,128)}', space=vmem, size = 0x1000, scoped, tag = 'scratch operand']
  #allocation3 [shape = 'f32[8,128]{1,0:T(8,128)}', space=vmem, size = 0x1000, scoped, tag = 'scratch operand']
  #allocation4 [shape = 'f32[8,128]{1,0:T(8,128)}', space=vmem, size = 0x1000, scoped, tag = 'scratch operand']
  #allocation5 [shape = 'f32[8,128]{1,0:T(8,128)}', space=vmem, size = 0x1000, scoped, tag = 'scratch operand']
  %s0 = inlined_call_operand.vmem [shape: f32[64,4], index: 0, kind: input, shape index: {}]
  %s1 = inlined_call_operand.vmem [shape: f32[4,512], index: 1, kind: input, shape index: {}]
  %s2 = inlined_call_operand.hbm [shape: f32[128,512], index: 2, kind: input, shape index: {}]
  %s3 = inlined_call_operand.vmem [shape: f32[1,512], index: 3, kind: input, shape index: {}]
  %s4 = inlined_call_operand.hbm [shape: f32[256,512], index: 4, kind: input, shape index: {}]
  %s5 = inlined_call_operand.vmem [shape: f32[1,512], index: 5, kind: input, shape index: {}]
  %s6 = inlined_call_operand.hbm [shape: f32[128,128], index: 6, kind: input, shape index: {}]
  %s7 = inlined_call_operand.vmem [shape: f32[1,128], index: 7, kind: input, shape index: {}]
  %s8 = inlined_call_operand.hbm [shape: f32[8,128], index: 8, kind: output, shape index: {}]
  %s9 = sld [smem:[#allocation0]]
  $region85: #{tpu_custom_call.1} parent=0
    _
  %s11 = ssub.s32 1, %s9
  %s12 = scalar_select 0, %s11, %s9
  $region1: #{tpu_custom_call.1} parent=0
    #allocation6 [shape = 'u8[262144]{0}', space=vmem, size = 0x40000, scoped, tag = 'input window, operand 2, single buffered']
    #allocation7 [shape = 's32[2]{0}', space=sflag, size = 0x8, scoped, tag = 'scoped memory for tpu_custom_call.1']
    #allocation8 [shape = 's32[2]{0}', space=sflag, size = 0x8, scoped, tag = 'scoped memory for tpu_custom_call.1']
    #allocation9 [shape = 'u8[524288]{0}', space=vmem, size = 0x80000, scoped, tag = 'input window, operand 4, single buffered']
    #allocation10 [shape = 's32[1]{0}', space=sflag, size = 0x4, scoped, tag = 'scoped memory for tpu_custom_call.1']
    #allocation11 [shape = 'u8[65536]{0}', space=vmem, size = 0x10000, scoped, tag = 'input window, operand 6, single buffered']
    #allocation12 [shape = 'u8[4096]{0}', space=vmem, size = 0x1000, scoped, tag = 'output window, operand 0, single buffered']
    %13 = vsyncpa [#allocation7], 0
    %14 = vsyncpa [#allocation10], 0
    %15 = vsyncpa [#allocation8], 0
    loop: start=0, step=1, limit=4
    $region2: #{tpu_custom_call.1} parent=1 // loop_pre_header
      _
    $region3: #{tpu_custom_call.1} parent=1 // loop_header
      %s17 = sphi 0, %s21
      %p18 = scmp.ge.s32.totalorder %s17, 4
      %s27 = sphi 0, %s29
      %s30 = sphi 0, %s27
      %s31 = sphi 0, %s30
      %s47 = sphi 0, %s31
      %s51 = sphi 0, %s51
      %s53 = sphi 0, %s51
      %s54 = sphi 0, %s53
      %s68 = sphi 0, %s54
      %s72 = sphi 0, %s72
      %s74 = sphi 0, %s72
      %s75 = sphi 0, %s74
      %s89 = sphi 0, %s75
      %s93 = sphi 0, %s93
      %s95 = sphi 0, %s93
      %s96 = sphi 0, %s95
      %s110 = sphi 0, %s96
      %s114 = sphi 0, %s114
      %s116 = sphi 0, %s114
      %s117 = sphi 0, %s116
      %s131 = sphi 0, %s117
      %s135 = sphi 0, %s135
      %s137 = sphi 0, %s135
      %s138 = sphi 0, %s137
      %s152 = sphi 0, %s138
      %s156 = sphi 0, %s156
      %s158 = sphi 0, %s156
      %s159 = sphi 0, %s158
      %s173 = sphi 0, %s159
      %s177 = sphi 0, %s177
      %s179 = sphi 0, %s177
      %s180 = sphi 0, %s179
      %s194 = sphi 0, %s180
      %s198 = sphi 0, %s198
      %s200 = sphi 0, %s198
      %s201 = sphi 0, %s200
      %s215 = sphi 0, %s201
    $region4: #{tpu_custom_call.1} parent=1 // loop_header_branch
      %20 = sbr.rel (%p18) target = $region8
    $region5: #{tpu_custom_call.1} parent=1 // loop_body
      %s22 = ssub.s32 %s17, 1
      %s23 = ssub.s32 %s17, 2
      %s24 = sadd.s32 %s17, 1
      %s25 = ssub.s32 %s17, %s24
      %p26 = scmp.eq.s32.totalorder %s25, 0
      %s28 = sadd.s32 %s27, 1
      %s29 = scalar_select %p26, %s27, %s28
      %p32 = pneg %p26
      %p33 = scmp.eq.s32.totalorder %s17, 1
      %p34 = por %p32, %p33
      %p35 = scmp.ne.s32.totalorder %s27, %s30
      %p36 = scmp.eq.s32.totalorder %s17, 0
      %p37 = por %p35, %p36
      %p38 = scmp.ne.s32.totalorder %s27, %s30
      %p39 = scmp.eq.s32.totalorder %s22, 1
      %p40 = por %p38, %p39
      %p41 = scmp.ne.s32.totalorder %s30, %s31
      %p42 = scmp.eq.s32.totalorder %s22, 0
      %p43 = por %p41, %p42
      %p44 = scmp.ne.s32.totalorder %s30, %s31
      %p45 = scmp.eq.s32.totalorder %s23, 1
      %p46 = por %p44, %p45
      %p48 = scmp.ne.s32.totalorder %s31, %s47
      %p49 = scmp.eq.s32.totalorder %s23, 0
      %p50 = por %p48, %p49
      %s52 = sadd.s32 %s51, 1
      %p55 = scmp.eq.s32.totalorder %s17, 1
      %p56 = scmp.ne.s32.totalorder %s51, %s53
      %p57 = scmp.eq.s32.totalorder %s17, 0
      %p58 = por %p56, %p57
      %p59 = scmp.ne.s32.totalorder %s51, %s53
      %p60 = scmp.eq.s32.totalorder %s22, 1
      %p61 = por %p59, %p60
      %p62 = scmp.ne.s32.totalorder %s53, %s54
      %p63 = scmp.eq.s32.totalorder %s22, 0
      %p64 = por %p62, %p63
      %p65 = scmp.ne.s32.totalorder %s53, %s54
      %p66 = scmp.eq.s32.totalorder %s23, 1
      %p67 = por %p65, %p66
      %p69 = scmp.ne.s32.totalorder %s54, %s68
      %p70 = scmp.eq.s32.totalorder %s23, 0
      %p71 = por %p69, %p70
      %s73 = sadd.s32 %s72, 1
      %p76 = scmp.eq.s32.totalorder %s17, 1
      %p77 = scmp.ne.s32.totalorder %s72, %s74
      %p78 = scmp.eq.s32.totalorder %s17, 0
      %p79 = por %p77, %p78
      %p80 = scmp.ne.s32.totalorder %s72, %s74
      %p81 = scmp.eq.s32.totalorder %s22, 1
      %p82 = por %p80, %p81
      %p83 = scmp.ne.s32.totalorder %s74, %s75
      %p84 = scmp.eq.s32.totalorder %s22, 0
      %p85 = por %p83, %p84
      %p86 = scmp.ne.s32.totalorder %s74, %s75
      %p87 = scmp.eq.s32.totalorder %s23, 1
      %p88 = por %p86, %p87
      %p90 = scmp.ne.s32.totalorder %s75, %s89
      %p91 = scmp.eq.s32.totalorder %s23, 0
      %p92 = por %p90, %p91
      %s94 = sadd.s32 %s93, 1
      %p97 = scmp.eq.s32.totalorder %s17, 1
      %p98 = scmp.ne.s32.totalorder %s93, %s95
      %p99 = scmp.eq.s32.totalorder %s17, 0
      %p100 = por %p98, %p99
      %p101 = scmp.ne.s32.totalorder %s93, %s95
      %p102 = scmp.eq.s32.totalorder %s22, 1
      %p103 = por %p101, %p102
      %p104 = scmp.ne.s32.totalorder %s95, %s96
      %p105 = scmp.eq.s32.totalorder %s22, 0
      %p106 = por %p104, %p105
      %p107 = scmp.ne.s32.totalorder %s95, %s96
      %p108 = scmp.eq.s32.totalorder %s23, 1
      %p109 = por %p107, %p108
      %p111 = scmp.ne.s32.totalorder %s96, %s110
      %p112 = scmp.eq.s32.totalorder %s23, 0
      %p113 = por %p111, %p112
      %s115 = sadd.s32 %s114, 1
      %p118 = scmp.eq.s32.totalorder %s17, 1
      %p119 = scmp.ne.s32.totalorder %s114, %s116
      %p120 = scmp.eq.s32.totalorder %s17, 0
      %p121 = por %p119, %p120
      %p122 = scmp.ne.s32.totalorder %s114, %s116
      %p123 = scmp.eq.s32.totalorder %s22, 1
      %p124 = por %p122, %p123
      %p125 = scmp.ne.s32.totalorder %s116, %s117
      %p126 = scmp.eq.s32.totalorder %s22, 0
      %p127 = por %p125, %p126
      %p128 = scmp.ne.s32.totalorder %s116, %s117
      %p129 = scmp.eq.s32.totalorder %s23, 1
      %p130 = por %p128, %p129
      %p132 = scmp.ne.s32.totalorder %s117, %s131
      %p133 = scmp.eq.s32.totalorder %s23, 0
      %p134 = por %p132, %p133
      %s136 = sadd.s32 %s135, 1
      %p139 = scmp.eq.s32.totalorder %s17, 1
      %p140 = scmp.ne.s32.totalorder %s135, %s137
      %p141 = scmp.eq.s32.totalorder %s17, 0
      %p142 = por %p140, %p141
      %p143 = scmp.ne.s32.totalorder %s135, %s137
      %p144 = scmp.eq.s32.totalorder %s22, 1
      %p145 = por %p143, %p144
      %p146 = scmp.ne.s32.totalorder %s137, %s138
      %p147 = scmp.eq.s32.totalorder %s22, 0
      %p148 = por %p146, %p147
      %p149 = scmp.ne.s32.totalorder %s137, %s138
      %p150 = scmp.eq.s32.totalorder %s23, 1
      %p151 = por %p149, %p150
      %p153 = scmp.ne.s32.totalorder %s138, %s152
      %p154 = scmp.eq.s32.totalorder %s23, 0
      %p155 = por %p153, %p154
      %s157 = sadd.s32 %s156, 1
      %p160 = scmp.eq.s32.totalorder %s17, 1
      %p161 = scmp.ne.s32.totalorder %s156, %s158
      %p162 = scmp.eq.s32.totalorder %s17, 0
      %p163 = por %p161, %p162
      %p164 = scmp.ne.s32.totalorder %s156, %s158
      %p165 = scmp.eq.s32.totalorder %s22, 1
      %p166 = por %p164, %p165
      %p167 = scmp.ne.s32.totalorder %s158, %s159
      %p168 = scmp.eq.s32.totalorder %s22, 0
      %p169 = por %p167, %p168
      %p170 = scmp.ne.s32.totalorder %s158, %s159
      %p171 = scmp.eq.s32.totalorder %s23, 1
      %p172 = por %p170, %p171
      %p174 = scmp.ne.s32.totalorder %s159, %s173
      %p175 = scmp.eq.s32.totalorder %s23, 0
      %p176 = por %p174, %p175
      %s178 = sadd.s32 %s177, 1
      %p181 = scmp.eq.s32.totalorder %s17, 1
      %p182 = scmp.ne.s32.totalorder %s177, %s179
      %p183 = scmp.eq.s32.totalorder %s17, 0
      %p184 = por %p182, %p183
      %p185 = scmp.ne.s32.totalorder %s177, %s179
      %p186 = scmp.eq.s32.totalorder %s22, 1
      %p187 = por %p185, %p186
      %p188 = scmp.ne.s32.totalorder %s179, %s180
      %p189 = scmp.eq.s32.totalorder %s22, 0
      %p190 = por %p188, %p189
      %p191 = scmp.ne.s32.totalorder %s179, %s180
      %p192 = scmp.eq.s32.totalorder %s23, 1
      %p193 = por %p191, %p192
      %p195 = scmp.ne.s32.totalorder %s180, %s194
      %p196 = scmp.eq.s32.totalorder %s23, 0
      %p197 = por %p195, %p196
      %s199 = sadd.s32 %s198, 1
      %p202 = scmp.eq.s32.totalorder %s17, 1
      %p203 = scmp.ne.s32.totalorder %s198, %s200
      %p204 = scmp.eq.s32.totalorder %s17, 0
      %p205 = por %p203, %p204
      %p206 = scmp.ne.s32.totalorder %s198, %s200
      %p207 = scmp.eq.s32.totalorder %s22, 1
      %p208 = por %p206, %p207
      %p209 = scmp.ne.s32.totalorder %s200, %s201
      %p210 = scmp.eq.s32.totalorder %s22, 0
      %p211 = por %p209, %p210
      %p212 = scmp.ne.s32.totalorder %s200, %s201
      %p213 = scmp.eq.s32.totalorder %s23, 1
      %p214 = por %p212, %p213
      %p216 = scmp.ne.s32.totalorder %s201, %s215
      %p217 = scmp.eq.s32.totalorder %s23, 0
      %p218 = por %p216, %p217
      %p219 = scmp.le.s32.totalorder 1, %s17
      %p220 = scmp.lt.s32.totalorder %s17, 3
      %p221 = pnand %p219, %p220
      %p222 = pneg %p221
      // Predicated region
      $region9: #{tpu_custom_call.1} parent=5 // pred_check
        _
      $region10: #{tpu_custom_call.1} parent=5 // pred_check_branch
        %224 = sbr.rel (%p221) target = $region12
      $region11: #{tpu_custom_call.1} parent=5 // pred_region
        %s225 = ssub.s32 %s17, 1
        // Predicated region
        $region13: #{tpu_custom_call.1} parent=11 // pred_check
          %p226 = pneg %p64
        $region14: #{tpu_custom_call.1} parent=11 // pred_check_branch
          %228 = sbr.rel (%p226) target = $region16
        $region15: #{tpu_custom_call.1} parent=11 // pred_region
          _
        $region16: #{tpu_custom_call.1} parent=11 // pred_fallthru
          _
        // Predicated region
        $region17: #{tpu_custom_call.1} parent=11 // pred_check
          %p229 = pneg %p85
        $region18: #{tpu_custom_call.1} parent=11 // pred_check_branch
          %231 = sbr.rel (%p229) target = $region20
        $region19: #{tpu_custom_call.1} parent=11 // pred_region
          %s233 = ssub.s32 8192, 8192
          %234 = vsyncadd [#allocation7], %s233
          %s235 = sshll.u32 [#allocation6], 4
          %s236 = int_to_ptr.vmem [resolvable:$true] %s235
          %241 = dma.hbm_to_vmem [thread:$0]  %s2, 8192, %s236, [#allocation7], 512, 512, 32
        $region20: #{tpu_custom_call.1} parent=11 // pred_fallthru
          _
        // Predicated region
        $region21: #{tpu_custom_call.1} parent=11 // pred_check
          %p242 = pneg %p106
        $region22: #{tpu_custom_call.1} parent=11 // pred_check_branch
          %244 = sbr.rel (%p242) target = $region24
        $region23: #{tpu_custom_call.1} parent=11 // pred_region
          _
        $region24: #{tpu_custom_call.1} parent=11 // pred_fallthru
          _
        // Predicated region
        $region25: #{tpu_custom_call.1} parent=11 // pred_check
          %p245 = pneg %p127
        $region26: #{tpu_custom_call.1} parent=11 // pred_check_branch
          %247 = sbr.rel (%p245) target = $region28
        $region27: #{tpu_custom_call.1} parent=11 // pred_region
          %s249 = ssub.s32 16384, 16384
          %250 = vsyncadd [#allocation10], %s249
          %s251 = sshll.u32 [#allocation9], 4
          %s252 = int_to_ptr.vmem [resolvable:$true] %s251
          %257 = dma.hbm_to_vmem [thread:$0]  %s4, 16384, %s252, [#allocation10], 512, 512, 32
        $region28: #{tpu_custom_call.1} parent=11 // pred_fallthru
          _
        // Predicated region
        $region29: #{tpu_custom_call.1} parent=11 // pred_check
          %p258 = pneg %p148
        $region30: #{tpu_custom_call.1} parent=11 // pred_check_branch
          %260 = sbr.rel (%p258) target = $region32
        $region31: #{tpu_custom_call.1} parent=11 // pred_region
          _
        $region32: #{tpu_custom_call.1} parent=11 // pred_fallthru
          _
        // Predicated region
        $region33: #{tpu_custom_call.1} parent=11 // pred_check
          %p261 = pneg %p169
        $region34: #{tpu_custom_call.1} parent=11 // pred_check_branch
          %263 = sbr.rel (%p261) target = $region36
        $region35: #{tpu_custom_call.1} parent=11 // pred_region
          %s265 = ssub.s32 2048, 2048
          %266 = vsyncadd [#allocation10], %s265
          %s267 = sshll.u32 [#allocation11], 4
          %s268 = int_to_ptr.vmem [resolvable:$true] %s267
          %273 = dma.hbm_to_vmem [thread:$0]  %s6, 2048, %s268, [#allocation10], 128, 128, 8
        $region36: #{tpu_custom_call.1} parent=11 // pred_fallthru
          _
        // Predicated region
        $region37: #{tpu_custom_call.1} parent=11 // pred_check
          %p274 = pneg %p190
        $region38: #{tpu_custom_call.1} parent=11 // pred_check_branch
          %276 = sbr.rel (%p274) target = $region40
        $region39: #{tpu_custom_call.1} parent=11 // pred_region
          _
        $region40: #{tpu_custom_call.1} parent=11 // pred_fallthru
          _
      $region12: #{tpu_custom_call.1} parent=5 // pred_fallthru
        _
      %p277 = scmp.lt.s32.totalorder %s17, 2
      // Predicated region
      $region41: #{tpu_custom_call.1} parent=5 // pred_check
        %p278 = pneg %p277
      $region42: #{tpu_custom_call.1} parent=5 // pred_check_branch
        %280 = sbr.rel (%p278) target = $region44
      $region43: #{tpu_custom_call.1} parent=5 // pred_region
        // Predicated region
        $region45: #{tpu_custom_call.1} parent=43 // pred_check
          %p281 = pneg %p37
        $region46: #{tpu_custom_call.1} parent=43 // pred_check_branch
          %283 = sbr.rel (%p281) target = $region48
        $region47: #{tpu_custom_call.1} parent=43 // pred_region
          %s284 = smul.u32 4, %s17
          %p285 = scmp.lt.s32.totalorder %s284, 7
          %s286 = scalar_select %p285, %s284, 7
          %s287 = smul.addr %s286, 8
          %s288 = scalar_lea.vmem %s0, %s287
          %s289 = smul.u32 4, %s17
        $region48: #{tpu_custom_call.1} parent=43 // pred_fallthru
          _
      $region44: #{tpu_custom_call.1} parent=5 // pred_fallthru
        _
      %p290 = scmp.le.s32.totalorder 1, %s17
      %p291 = scmp.lt.s32.totalorder %s17, 3
      %p292 = pnand %p290, %p291
      %p293 = pneg %p292
      // Predicated region
      $region49: #{tpu_custom_call.1} parent=5 // pred_check
        _
      $region50: #{tpu_custom_call.1} parent=5 // pred_check_branch
        %295 = sbr.rel (%p292) target = $region52
      $region51: #{tpu_custom_call.1} parent=5 // pred_region
        %s296 = ssub.s32 %s17, 1
        // Predicated region
        $region53: #{tpu_custom_call.1} parent=51 // pred_check
          %p297 = pneg %p85
        $region54: #{tpu_custom_call.1} parent=51 // pred_check_branch
          %299 = sbr.rel (%p297) target = $region56
        $region55: #{tpu_custom_call.1} parent=51 // pred_region
          %300 = dma.done [#allocation7], 8192
        $region56: #{tpu_custom_call.1} parent=51 // pred_fallthru
          _
        // Predicated region
        $region57: #{tpu_custom_call.1} parent=51 // pred_check
          %p301 = pneg %p127
        $region58: #{tpu_custom_call.1} parent=51 // pred_check_branch
          %303 = sbr.rel (%p301) target = $region60
        $region59: #{tpu_custom_call.1} parent=51 // pred_region
          %304 = dma.done [#allocation10], 16384
        $region60: #{tpu_custom_call.1} parent=51 // pred_fallthru
          _
        // Predicated region
        $region61: #{tpu_custom_call.1} parent=51 // pred_check
          %p305 = pneg %p169
        $region62: #{tpu_custom_call.1} parent=51 // pred_check_branch
          %307 = sbr.rel (%p305) target = $region64
        $region63: #{tpu_custom_call.1} parent=51 // pred_region
          %308 = dma.done [#allocation10], 2048
        $region64: #{tpu_custom_call.1} parent=51 // pred_fallthru
          _
        %s309 = smul.u32 4, %s22
        %p310 = scmp.lt.s32.totalorder %s309, 7
        %s311 = scalar_select %p310, %s309, 7
        %s312 = smul.addr %s311, 8
        %s313 = scalar_lea.vmem %s0, %s312
        %p314 = pneg %p43
        %p315 = pneg %p40
        %p316 = pneg %p64
        %p317 = pneg %p61
        %p318 = pneg %p85
        %p319 = pneg %p82
        %p320 = pneg %p106
        %p321 = pneg %p103
        %p322 = pneg %p127
        %p323 = pneg %p124
        %p324 = pneg %p148
        %p325 = pneg %p145
        %p326 = pneg %p169
        %p327 = pneg %p166
        %p328 = pneg %p190
        %p329 = pneg %p187
        %p330 = pneg %p211
        %p331 = pneg %p208
        %s332 = smul.u32 4, %s22
        %p333 = scmp.lt.s32.totalorder %s332, 7
        %s334 = scalar_select %p333, %s332, 7
        %s335 = smul.addr %s334, 8
        %s336 = scalar_lea.vmem %s0, %s335
        %s337 = smul.u32 4, %s22
        %p338 = scmp.eq.s32.totalorder %s22, 0
        // Predicated region
        $region65: #{tpu_custom_call.1} parent=51 // pred_check
          %p339 = pneg %p338
        $region66: #{tpu_custom_call.1} parent=51 // pred_check_branch
          %341 = sbr.rel (%p339) target = $region68
        $region67: #{tpu_custom_call.1} parent=51 // pred_region
          %342 = vst [vmem:[#allocation2] sm:$0xff] 0.0
          %343 = vst [vmem:[#allocation3] sm:$0xff] 0.0
          %344 = vst [vmem:[#allocation4] sm:$0xff] 0.0
          %345 = vst [vmem:[#allocation5] sm:$0xff] 0.0
        $region68: #{tpu_custom_call.1} parent=51 // pred_fallthru
          _
        %v346 = vld [vmem:[%s336] sm:$0xff]
        %v347 = vld [vmem:[%s336 + $0x8] sm:$0xff]
        %v348 = vld [vmem:[%s336 + $0x10] sm:$0xff]
        %v349 = vld [vmem:[%s336 + $0x18] sm:$0xff]
        %v350 = vld [vmem:[%s1] sm:$0xff]
        %v351 = vld [vmem:[%s1 + $0x8] sm:$0xff]
        %v354 = vcombine.high %v350, %v350
        %v355 = vcombine.high %v351, %v351
        %vm356 = vcmask 31744
        %v358 = vsel %vm356, %v346, 0
        %v361 = vsel %vm356, %v347, 0
        %v364 = vsel %vm356, %v348, 0
        %v367 = vsel %vm356, %v349, 0
        %vm369 = vcmask 1043456
        %v370 = vsel %vm369, %v350, 0
        %v372 = vsel %vm369, %v354, 0
        %v374 = vsel %vm369, %v351, 0
        %v376 = vsel %vm369, %v355, 0
        %378 = vmatprep.subr.mxu0 0.0
        %379 = vmatpush1.msra.mxu0 0.0
        %380 = vmatprep.subr.mxu0 0.0
        %381 = vmatpush1.msra.mxu0 0.0
        %382 = vmatprep.subr.mxu0 0.0
        %383 = vmatpush1.msra.mxu0 0.0
        %384 = vmatprep.subr.mxu0 0.0
        %385 = vmatpush1.msra.mxu0 0.0
        %386 = vmatprep.subr.mxu0 0.0
        %387 = vmatpush1.msra.mxu0 0.0
        %388 = vmatprep.subr.mxu0 0.0
        %389 = vmatpush1.msra.mxu0 0.0
        %390 = vmatprep.subr.mxu0 0.0
        %391 = vmatpush1.msra.mxu0 0.0
        %392 = vmatprep.subr.mxu0 0.0
        %393 = vmatpush1.msra.mxu0 0.0
        %394 = vmatprep.subr.mxu0 0.0
        %395 = vmatpush1.msra.mxu0 0.0
        %396 = vmatprep.subr.mxu0 0.0
        %397 = vmatpush1.msra.mxu0 0.0
        %398 = vmatprep.subr.mxu0 0.0
        %399 = vmatpush1.msra.mxu0 0.0
        %400 = vmatprep.subr.mxu0 0.0
        %401 = vmatpush1.msra.mxu0 0.0
        %402 = vmatprep.subr.mxu0 0.0
        %403 = vmatpush1.msra.mxu0 0.0
        %404 = vmatprep.subr.mxu0 0.0
        %405 = vmatpush1.msra.mxu0 0.0
        %406 = vmatprep.subr.mxu0 0.0
        %407 = vmatpush1.msra.mxu0 0.0
        %408 = vmatprep.subr.mxu0 %v372
        %409 = vmatpush1.msra.mxu0 %v370
        %410 = vmatprep.subr.mxu0 0.0
        %411 = vmatpush2.msra.mxu0 0.0
        %412 = vmatprep.subr.mxu0 0.0
        %413 = vmatpush2.msra.mxu0 0.0
        %414 = vmatprep.subr.mxu0 0.0
        %415 = vmatpush2.msra.mxu0 0.0
        %416 = vmatprep.subr.mxu0 0.0
        %417 = vmatpush2.msra.mxu0 0.0
        %418 = vmatprep.subr.mxu0 0.0
        %419 = vmatpush2.msra.mxu0 0.0
        %420 = vmatprep.subr.mxu0 0.0
        %421 = vmatpush2.msra.mxu0 0.0
        %422 = vmatprep.subr.mxu0 0.0
        %423 = vmatpush2.msra.mxu0 0.0
        %424 = vmatprep.subr.mxu0 0.0
        %425 = vmatpush2.msra.mxu0 0.0
        %426 = vmatprep.subr.mxu0 0.0
        %427 = vmatpush2.msra.mxu0 0.0
        %428 = vmatprep.subr.mxu0 0.0
        %429 = vmatpush2.msra.mxu0 0.0
        %430 = vmatprep.subr.mxu0 0.0
        %431 = vmatpush2.msra.mxu0 0.0
        %432 = vmatprep.subr.mxu0 0.0
        %433 = vmatpush2.msra.mxu0 0.0
        %434 = vmatprep.subr.mxu0 0.0
        %435 = vmatpush2.msra.mxu0 0.0
        %436 = vmatprep.subr.mxu0 0.0
        %437 = vmatpush2.msra.mxu0 0.0
        %438 = vmatprep.subr.mxu0 0.0
        %439 = vmatpush2.msra.mxu0 0.0
        %440 = vmatprep.subr.mxu0 0.0
        %441 = vmatpush2.msra.mxu0 0.0
        %442 = vmatprep.mubr.f32.mxu0 0.0
        %443 = vmatmul.mubr.f32.gmra.mxu0 %v358
        %v444 = vpop.f32.mrf.mxu0
        %v445 = vadd.f32 0.0, %v444
        %v446 = vpop.f32.mrf.mxu0
        %v447 = vadd.f32 0.0, %v446
        %448 = vmatprep.mubr.f32.mxu0 0.0
        %449 = vmatmul.mubr.f32.gmra.mxu0 %v361
        %v450 = vpop.f32.mrf.mxu0
        %v451 = vadd.f32 0.0, %v450
        %v452 = vpop.f32.mrf.mxu0
        %v453 = vadd.f32 0.0, %v452
        %454 = vmatprep.mubr.f32.mxu0 0.0
        %455 = vmatmul.mubr.f32.gmra.mxu0 %v364
        %v456 = vpop.f32.mrf.mxu0
        %v457 = vadd.f32 0.0, %v456
        %v458 = vpop.f32.mrf.mxu0
        %v459 = vadd.f32 0.0, %v458
        %460 = vmatprep.mubr.f32.mxu0 0.0
        %461 = vmatmul.mubr.f32.gmra.mxu0 %v367
        %v462 = vpop.f32.mrf.mxu0
        %v463 = vadd.f32 0.0, %v462
        %v464 = vpop.f32.mrf.mxu0
        %v465 = vadd.f32 0.0, %v464
        %466 = vdwg.mxu0
        %467 = vmatprep.subr.mxu0 0.0
        %468 = vmatpush1.msra.mxu0 0.0
        %469 = vmatprep.subr.mxu0 0.0
        %470 = vmatpush1.msra.mxu0 0.0
        %471 = vmatprep.subr.mxu0 0.0
        %472 = vmatpush1.msra.mxu0 0.0
        %473 = vmatprep.subr.mxu0 0.0
        %474 = vmatpush1.msra.mxu0 0.0
        %475 = vmatprep.subr.mxu0 0.0
        %476 = vmatpush1.msra.mxu0 0.0
        %477 = vmatprep.subr.mxu0 0.0
        %478 = vmatpush1.msra.mxu0 0.0
        %479 = vmatprep.subr.mxu0 0.0
        %480 = vmatpush1.msra.mxu0 0.0
        %481 = vmatprep.subr.mxu0 0.0
        %482 = vmatpush1.msra.mxu0 0.0
        %483 = vmatprep.subr.mxu0 0.0
        %484 = vmatpush1.msra.mxu0 0.0
        %485 = vmatprep.subr.mxu0 0.0
        %486 = vmatpush1.msra.mxu0 0.0
        %487 = vmatprep.subr.mxu0 0.0
        %488 = vmatpush1.msra.mxu0 0.0
        %489 = vmatprep.subr.mxu0 0.0
        %490 = vmatpush1.msra.mxu0 0.0
        %491 = vmatprep.subr.mxu0 0.0
        %492 = vmatpush1.msra.mxu0 0.0
        %493 = vmatprep.subr.mxu0 0.0
        %494 = vmatpush1.msra.mxu0 0.0
        %495 = vmatprep.subr.mxu0 0.0
        %496 = vmatpush1.msra.mxu0 0.0
        %497 = vmatprep.subr.mxu0 %v376
        %498 = vmatpush1.msra.mxu0 %v374
        %499 = vmatprep.subr.mxu0 0.0
        %500 = vmatpush2.msra.mxu0 0.0
        %501 = vmatprep.subr.mxu0 0.0
        %502 = vmatpush2.msra.mxu0 0.0
        %503 = vmatprep.subr.mxu0 0.0
        %504 = vmatpush2.msra.mxu0 0.0
        %505 = vmatprep.subr.mxu0 0.0
        %506 = vmatpush2.msra.mxu0 0.0
        %507 = vmatprep.subr.mxu0 0.0
        %508 = vmatpush2.msra.mxu0 0.0
        %509 = vmatprep.subr.mxu0 0.0
        %510 = vmatpush2.msra.mxu0 0.0
        %511 = vmatprep.subr.mxu0 0.0
        %512 = vmatpush2.msra.mxu0 0.0
        %513 = vmatprep.subr.mxu0 0.0
        %514 = vmatpush2.msra.mxu0 0.0
        %515 = vmatprep.subr.mxu0 0.0
        %516 = vmatpush2.msra.mxu0 0.0
        %517 = vmatprep.subr.mxu0 0.0
        %518 = vmatpush2.msra.mxu0 0.0
        %519 = vmatprep.subr.mxu0 0.0
        %520 = vmatpush2.msra.mxu0 0.0
        %521 = vmatprep.subr.mxu0 0.0
        %522 = vmatpush2.msra.mxu0 0.0
        %523 = vmatprep.subr.mxu0 0.0
        %524 = vmatpush2.msra.mxu0 0.0
        %525 = vmatprep.subr.mxu0 0.0
        %526 = vmatpush2.msra.mxu0 0.0
        %527 = vmatprep.subr.mxu0 0.0
        %528 = vmatpush2.msra.mxu0 0.0
        %529 = vmatprep.subr.mxu0 0.0
        %530 = vmatpush2.msra.mxu0 0.0
        %531 = vmatprep.mubr.f32.mxu0 0.0
        %532 = vmatmul.mubr.f32.gmra.mxu0 %v358
        %v533 = vpop.f32.mrf.mxu0
        %v534 = vadd.f32 0.0, %v533
        %v535 = vpop.f32.mrf.mxu0
        %v536 = vadd.f32 0.0, %v535
        %537 = vmatprep.mubr.f32.mxu0 0.0
        %538 = vmatmul.mubr.f32.gmra.mxu0 %v361
        %v539 = vpop.f32.mrf.mxu0
        %v540 = vadd.f32 0.0, %v539
        %v541 = vpop.f32.mrf.mxu0
        %v542 = vadd.f32 0.0, %v541
        %543 = vmatprep.mubr.f32.mxu0 0.0
        %544 = vmatmul.mubr.f32.gmra.mxu0 %v364
        %v545 = vpop.f32.mrf.mxu0
        %v546 = vadd.f32 0.0, %v545
        %v547 = vpop.f32.mrf.mxu0
        %v548 = vadd.f32 0.0, %v547
        %549 = vmatprep.mubr.f32.mxu0 0.0
        %550 = vmatmul.mubr.f32.gmra.mxu0 %v367
        %v551 = vpop.f32.mrf.mxu0
        %v552 = vadd.f32 0.0, %v551
        %v553 = vpop.f32.mrf.mxu0
        %v554 = vadd.f32 0.0, %v553
        %555 = vdwg.mxu0
        %v556 = vld [vmem:[#allocation6] sm:$0xff]
        %v557 = vld [vmem:[#allocation6 + $0x8] sm:$0xff]
        %v558 = vld [vmem:[#allocation6 + $0x10] sm:$0xff]
        %v559 = vld [vmem:[#allocation6 + $0x18] sm:$0xff]
        %v560 = vld [vmem:[#allocation6 + $0x20] sm:$0xff]
        %v561 = vld [vmem:[#allocation6 + $0x28] sm:$0xff]
        %v562 = vld [vmem:[#allocation6 + $0x30] sm:$0xff]
        %v563 = vld [vmem:[#allocation6 + $0x38] sm:$0xff]
        %v564 = vld [vmem:[#allocation6 + $0x40] sm:$0xff]
        %v565 = vld [vmem:[#allocation6 + $0x48] sm:$0xff]
        %v566 = vld [vmem:[#allocation6 + $0x50] sm:$0xff]
        %v567 = vld [vmem:[#allocation6 + $0x58] sm:$0xff]
        %v568 = vld [vmem:[#allocation6 + $0x60] sm:$0xff]
        %v569 = vld [vmem:[#allocation6 + $0x68] sm:$0xff]
        %v570 = vld [vmem:[#allocation6 + $0x70] sm:$0xff]
        %v571 = vld [vmem:[#allocation6 + $0x78] sm:$0xff]
        %v572 = vld [vmem:[#allocation6 + $0x80] sm:$0xff]
        %v573 = vld [vmem:[#allocation6 + $0x88] sm:$0xff]
        %v574 = vld [vmem:[#allocation6 + $0x90] sm:$0xff]
        %v575 = vld [vmem:[#allocation6 + $0x98] sm:$0xff]
        %v576 = vld [vmem:[#allocation6 + $0xa0] sm:$0xff]
        %v577 = vld [vmem:[#allocation6 + $0xa8] sm:$0xff]
        %v578 = vld [vmem:[#allocation6 + $0xb0] sm:$0xff]
        %v579 = vld [vmem:[#allocation6 + $0xb8] sm:$0xff]
        %v580 = vld [vmem:[#allocation6 + $0xc0] sm:$0xff]
        %v581 = vld [vmem:[#allocation6 + $0xc8] sm:$0xff]
        %v582 = vld [vmem:[#allocation6 + $0xd0] sm:$0xff]
        %v583 = vld [vmem:[#allocation6 + $0xd8] sm:$0xff]
        %v584 = vld [vmem:[#allocation6 + $0xe0] sm:$0xff]
        %v585 = vld [vmem:[#allocation6 + $0xe8] sm:$0xff]
        %v586 = vld [vmem:[#allocation6 + $0xf0] sm:$0xff]
        %v587 = vld [vmem:[#allocation6 + $0xf8] sm:$0xff]
        %v588 = vld [vmem:[#allocation6 + $0x100] sm:$0xff]
        %v589 = vld [vmem:[#allocation6 + $0x108] sm:$0xff]
        %v590 = vld [vmem:[#allocation6 + $0x110] sm:$0xff]
        %v591 = vld [vmem:[#allocation6 + $0x118] sm:$0xff]
        %v592 = vld [vmem:[#allocation6 + $0x120] sm:$0xff]
        %v593 = vld [vmem:[#allocation6 + $0x128] sm:$0xff]
        %v594 = vld [vmem:[#allocation6 + $0x130] sm:$0xff]
        %v595 = vld [vmem:[#allocation6 + $0x138] sm:$0xff]
        %v596 = vld [vmem:[#allocation6 + $0x140] sm:$0xff]
        %v597 = vld [vmem:[#allocation6 + $0x148] sm:$0xff]
        %v598 = vld [vmem:[#allocation6 + $0x150] sm:$0xff]
        %v599 = vld [vmem:[#allocation6 + $0x158] sm:$0xff]
        %v600 = vld [vmem:[#allocation6 + $0x160] sm:$0xff]
        %v601 = vld [vmem:[#allocation6 + $0x168] sm:$0xff]
        %v602 = vld [vmem:[#allocation6 + $0x170] sm:$0xff]
        %v603 = vld [vmem:[#allocation6 + $0x178] sm:$0xff]
        %v604 = vld [vmem:[#allocation6 + $0x180] sm:$0xff]
        %v605 = vld [vmem:[#allocation6 + $0x188] sm:$0xff]
        %v606 = vld [vmem:[#allocation6 + $0x190] sm:$0xff]
        %v607 = vld [vmem:[#allocation6 + $0x198] sm:$0xff]
        %v608 = vld [vmem:[#allocation6 + $0x1a0] sm:$0xff]
        %v609 = vld [vmem:[#allocation6 + $0x1a8] sm:$0xff]
        %v610 = vld [vmem:[#allocation6 + $0x1b0] sm:$0xff]
        %v611 = vld [vmem:[#allocation6 + $0x1b8] sm:$0xff]
        %v612 = vld [vmem:[#allocation6 + $0x1c0] sm:$0xff]
        %v613 = vld [vmem:[#allocation6 + $0x1c8] sm:$0xff]
        %v614 = vld [vmem:[#allocation6 + $0x1d0] sm:$0xff]
        %v615 = vld [vmem:[#allocation6 + $0x1d8] sm:$0xff]
        %v616 = vld [vmem:[#allocation6 + $0x1e0] sm:$0xff]
        %v617 = vld [vmem:[#allocation6 + $0x1e8] sm:$0xff]
        %v618 = vld [vmem:[#allocation6 + $0x1f0] sm:$0xff]
        %v619 = vld [vmem:[#allocation6 + $0x1f8] sm:$0xff]
        %v620 = vld [vmem:[%s3] sm:$0xf]
        %v621 = vld [vmem:[#allocation9] sm:$0xff]
        %v622 = vld [vmem:[#allocation9 + $0x8] sm:$0xff]
        %v623 = vld [vmem:[#allocation9 + $0x10] sm:$0xff]
        %v624 = vld [vmem:[#allocation9 + $0x18] sm:$0xff]
        %v625 = vld [vmem:[#allocation9 + $0x20] sm:$0xff]
        %v626 = vld [vmem:[#allocation9 + $0x28] sm:$0xff]
        %v627 = vld [vmem:[#allocation9 + $0x30] sm:$0xff]
        %v628 = vld [vmem:[#allocation9 + $0x38] sm:$0xff]
        %v629 = vld [vmem:[#allocation9 + $0x40] sm:$0xff]
        %v630 = vld [vmem:[#allocation9 + $0x48] sm:$0xff]
        %v631 = vld [vmem:[#allocation9 + $0x50] sm:$0xff]
        %v632 = vld [vmem:[#allocation9 + $0x58] sm:$0xff]
        %v633 = vld [vmem:[#allocation9 + $0x60] sm:$0xff]
        %v634 = vld [vmem:[#allocation9 + $0x68] sm:$0xff]
        %v635 = vld [vmem:[#allocation9 + $0x70] sm:$0xff]
        %v636 = vld [vmem:[#allocation9 + $0x78] sm:$0xff]
        %v637 = vld [vmem:[#allocation9 + $0x80] sm:$0xff]
        %v638 = vld [vmem:[#allocation9 + $0x88] sm:$0xff]
        %v639 = vld [vmem:[#allocation9 + $0x90] sm:$0xff]
        %v640 = vld [vmem:[#allocation9 + $0x98] sm:$0xff]
        %v641 = vld [vmem:[#allocation9 + $0xa0] sm:$0xff]
        %v642 = vld [vmem:[#allocation9 + $0xa8] sm:$0xff]
        %v643 = vld [vmem:[#allocation9 + $0xb0] sm:$0xff]
        %v644 = vld [vmem:[#allocation9 + $0xb8] sm:$0xff]
        %v645 = vld [vmem:[#allocation9 + $0xc0] sm:$0xff]
        %v646 = vld [vmem:[#allocation9 + $0xc8] sm:$0xff]
        %v647 = vld [vmem:[#allocation9 + $0xd0] sm:$0xff]
        %v648 = vld [vmem:[#allocation9 + $0xd8] sm:$0xff]
        %v649 = vld [vmem:[#allocation9 + $0xe0] sm:$0xff]
        %v650 = vld [vmem:[#allocation9 + $0xe8] sm:$0xff]
        %v651 = vld [vmem:[#allocation9 + $0xf0] sm:$0xff]
        %v652 = vld [vmem:[#allocation9 + $0xf8] sm:$0xff]
        %v653 = vld [vmem:[#allocation9 + $0x100] sm:$0xff]
        %v654 = vld [vmem:[#allocation9 + $0x108] sm:$0xff]
        %v655 = vld [vmem:[#allocation9 + $0x110] sm:$0xff]
        %v656 = vld [vmem:[#allocation9 + $0x118] sm:$0xff]
        %v657 = vld [vmem:[#allocation9 + $0x120] sm:$0xff]
        %v658 = vld [vmem:[#allocation9 + $0x128] sm:$0xff]
        %v659 = vld [vmem:[#allocation9 + $0x130] sm:$0xff]
        %v660 = vld [vmem:[#allocation9 + $0x138] sm:$0xff]
        %v661 = vld [vmem:[#allocation9 + $0x140] sm:$0xff]
        %v662 = vld [vmem:[#allocation9 + $0x148] sm:$0xff]
        %v663 = vld [vmem:[#allocation9 + $0x150] sm:$0xff]
        %v664 = vld [vmem:[#allocation9 + $0x158] sm:$0xff]
        %v665 = vld [vmem:[#allocation9 + $0x160] sm:$0xff]
        %v666 = vld [vmem:[#allocation9 + $0x168] sm:$0xff]
        %v667 = vld [vmem:[#allocation9 + $0x170] sm:$0xff]
        %v668 = vld [vmem:[#allocation9 + $0x178] sm:$0xff]
        %v669 = vld [vmem:[#allocation9 + $0x180] sm:$0xff]
        %v670 = vld [vmem:[#allocation9 + $0x188] sm:$0xff]
        %v671 = vld [vmem:[#allocation9 + $0x190] sm:$0xff]
        %v672 = vld [vmem:[#allocation9 + $0x198] sm:$0xff]
        %v673 = vld [vmem:[#allocation9 + $0x1a0] sm:$0xff]
        %v674 = vld [vmem:[#allocation9 + $0x1a8] sm:$0xff]
        %v675 = vld [vmem:[#allocation9 + $0x1b0] sm:$0xff]
        %v676 = vld [vmem:[#allocation9 + $0x1b8] sm:$0xff]
        %v677 = vld [vmem:[#allocation9 + $0x1c0] sm:$0xff]
        %v678 = vld [vmem:[#allocation9 + $0x1c8] sm:$0xff]
        %v679 = vld [vmem:[#allocation9 + $0x1d0] sm:$0xff]
        %v680 = vld [vmem:[#allocation9 + $0x1d8] sm:$0xff]
        %v681 = vld [vmem:[#allocation9 + $0x1e0] sm:$0xff]
        %v682 = vld [vmem:[#allocation9 + $0x1e8] sm:$0xff]
        %v683 = vld [vmem:[#allocation9 + $0x1f0] sm:$0xff]
        %v684 = vld [vmem:[#allocation9 + $0x1f8] sm:$0xff]
        %v685 = vld [vmem:[#allocation9 + $0x200] sm:$0xff]
        %v686 = vld [vmem:[#allocation9 + $0x208] sm:$0xff]
        %v687 = vld [vmem:[#allocation9 + $0x210] sm:$0xff]
        %v688 = vld [vmem:[#allocation9 + $0x218] sm:$0xff]
        %v689 = vld [vmem:[#allocation9 + $0x220] sm:$0xff]
        %v690 = vld [vmem:[#allocation9 + $0x228] sm:$0xff]
        %v691 = vld [vmem:[#allocation9 + $0x230] sm:$0xff]
        %v692 = vld [vmem:[#allocation9 + $0x238] sm:$0xff]
        %v693 = vld [vmem:[#allocation9 + $0x240] sm:$0xff]
        %v694 = vld [vmem:[#allocation9 + $0x248] sm:$0xff]
        %v695 = vld [vmem:[#allocation9 + $0x250] sm:$0xff]
        %v696 = vld [vmem:[#allocation9 + $0x258] sm:$0xff]
        %v697 = vld [vmem:[#allocation9 + $0x260] sm:$0xff]
        %v698 = vld [vmem:[#allocation9 + $0x268] sm:$0xff]
        %v699 = vld [vmem:[#allocation9 + $0x270] sm:$0xff]
        %v700 = vld [vmem:[#allocation9 + $0x278] sm:$0xff]
        %v701 = vld [vmem:[#allocation9 + $0x280] sm:$0xff]
        %v702 = vld [vmem:[#allocation9 + $0x288] sm:$0xff]
        %v703 = vld [vmem:[#allocation9 + $0x290] sm:$0xff]
        %v704 = vld [vmem:[#allocation9 + $0x298] sm:$0xff]
        %v705 = vld [vmem:[#allocation9 + $0x2a0] sm:$0xff]
        %v706 = vld [vmem:[#allocation9 + $0x2a8] sm:$0xff]
        %v707 = vld [vmem:[#allocation9 + $0x2b0] sm:$0xff]
        %v708 = vld [vmem:[#allocation9 + $0x2b8] sm:$0xff]
        %v709 = vld [vmem:[#allocation9 + $0x2c0] sm:$0xff]
        %v710 = vld [vmem:[#allocation9 + $0x2c8] sm:$0xff]
        %v711 = vld [vmem:[#allocation9 + $0x2d0] sm:$0xff]
        %v712 = vld [vmem:[#allocation9 + $0x2d8] sm:$0xff]
        %v713 = vld [vmem:[#allocation9 + $0x2e0] sm:$0xff]
        %v714 = vld [vmem:[#allocation9 + $0x2e8] sm:$0xff]
        %v715 = vld [vmem:[#allocation9 + $0x2f0] sm:$0xff]
        %v716 = vld [vmem:[#allocation9 + $0x2f8] sm:$0xff]
        %v717 = vld [vmem:[#allocation9 + $0x300] sm:$0xff]
        %v718 = vld [vmem:[#allocation9 + $0x308] sm:$0xff]
        %v719 = vld [vmem:[#allocation9 + $0x310] sm:$0xff]
        %v720 = vld [vmem:[#allocation9 + $0x318] sm:$0xff]
        %v721 = vld [vmem:[#allocation9 + $0x320] sm:$0xff]
        %v722 = vld [vmem:[#allocation9 + $0x328] sm:$0xff]
        %v723 = vld [vmem:[#allocation9 + $0x330] sm:$0xff]
        %v724 = vld [vmem:[#allocation9 + $0x338] sm:$0xff]
        %v725 = vld [vmem:[#allocation9 + $0x340] sm:$0xff]
        %v726 = vld [vmem:[#allocation9 + $0x348] sm:$0xff]
        %v727 = vld [vmem:[#allocation9 + $0x350] sm:$0xff]
        %v728 = vld [vmem:[#allocation9 + $0x358] sm:$0xff]
        %v729 = vld [vmem:[#allocation9 + $0x360] sm:$0xff]
        %v730 = vld [vmem:[#allocation9 + $0x368] sm:$0xff]
        %v731 = vld [vmem:[#allocation9 + $0x370] sm:$0xff]
        %v732 = vld [vmem:[#allocation9 + $0x378] sm:$0xff]
        %v733 = vld [vmem:[#allocation9 + $0x380] sm:$0xff]
        %v734 = vld [vmem:[#allocation9 + $0x388] sm:$0xff]
        %v735 = vld [vmem:[#allocation9 + $0x390] sm:$0xff]
        %v736 = vld [vmem:[#allocation9 + $0x398] sm:$0xff]
        %v737 = vld [vmem:[#allocation9 + $0x3a0] sm:$0xff]
        %v738 = vld [vmem:[#allocation9 + $0x3a8] sm:$0xff]
        %v739 = vld [vmem:[#allocation9 + $0x3b0] sm:$0xff]
        %v740 = vld [vmem:[#allocation9 + $0x3b8] sm:$0xff]
        %v741 = vld [vmem:[#allocation9 + $0x3c0] sm:$0xff]
        %v742 = vld [vmem:[#allocation9 + $0x3c8] sm:$0xff]
        %v743 = vld [vmem:[#allocation9 + $0x3d0] sm:$0xff]
        %v744 = vld [vmem:[#allocation9 + $0x3d8] sm:$0xff]
        %v745 = vld [vmem:[#allocation9 + $0x3e0] sm:$0xff]
        %v746 = vld [vmem:[#allocation9 + $0x3e8] sm:$0xff]
        %v747 = vld [vmem:[#allocation9 + $0x3f0] sm:$0xff]
        %v748 = vld [vmem:[#allocation9 + $0x3f8] sm:$0xff]
        %v749 = vld [vmem:[%s5] sm:$0xf]
        %v750 = vld [vmem:[#allocation2] sm:$0xff]
        %v751 = vld [vmem:[#allocation3] sm:$0xff]
        %v752 = vld [vmem:[#allocation4] sm:$0xff]
        %v753 = vld [vmem:[#allocation5] sm:$0xff]
        %754 = vmatprep.subr.mxu0 %v617
        %755 = vmatpush1.msra.mxu0 %v616
        %756 = vmatprep.subr.mxu0 %v613
        %757 = vmatpush1.msra.mxu0 %v612
        %758 = vmatprep.subr.mxu0 %v609
        %759 = vmatpush1.msra.mxu0 %v608
        %760 = vmatprep.subr.mxu0 %v605
        %761 = vmatpush1.msra.mxu0 %v604
        %762 = vmatprep.subr.mxu0 %v601
        %763 = vmatpush1.msra.mxu0 %v600
        %764 = vmatprep.subr.mxu0 %v597
        %765 = vmatpush1.msra.mxu0 %v596
        %766 = vmatprep.subr.mxu0 %v593
        %767 = vmatpush1.msra.mxu0 %v592
        %768 = vmatprep.subr.mxu0 %v589
        %769 = vmatpush1.msra.mxu0 %v588
        %770 = vmatprep.subr.mxu0 %v585
        %771 = vmatpush1.msra.mxu0 %v584
        %772 = vmatprep.subr.mxu0 %v581
        %773 = vmatpush1.msra.mxu0 %v580
        %774 = vmatprep.subr.mxu0 %v577
        %775 = vmatpush1.msra.mxu0 %v576
        %776 = vmatprep.subr.mxu0 %v573
        %777 = vmatpush1.msra.mxu0 %v572
        %778 = vmatprep.subr.mxu0 %v569
        %779 = vmatpush1.msra.mxu0 %v568
        %780 = vmatprep.subr.mxu0 %v565
        %781 = vmatpush1.msra.mxu0 %v564
        %782 = vmatprep.subr.mxu0 %v561
        %783 = vmatpush1.msra.mxu0 %v560
        %784 = vmatprep.subr.mxu0 %v557
        %785 = vmatpush1.msra.mxu0 %v556
        %786 = vmatprep.subr.mxu0 0.0
        %787 = vmatpush2.msra.mxu0 0.0
        %788 = vmatprep.subr.mxu0 0.0
        %789 = vmatpush2.msra.mxu0 0.0
        %790 = vmatprep.subr.mxu0 0.0
        %791 = vmatpush2.msra.mxu0 0.0
        %792 = vmatprep.subr.mxu0 0.0
        %793 = vmatpush2.msra.mxu0 0.0
        %794 = vmatprep.subr.mxu0 0.0
        %795 = vmatpush2.msra.mxu0 0.0
        %796 = vmatprep.subr.mxu0 0.0
        %797 = vmatpush2.msra.mxu0 0.0
        %798 = vmatprep.subr.mxu0 0.0
        %799 = vmatpush2.msra.mxu0 0.0
        %800 = vmatprep.subr.mxu0 0.0
        %801 = vmatpush2.msra.mxu0 0.0
        %802 = vmatprep.subr.mxu0 0.0
        %803 = vmatpush2.msra.mxu0 0.0
        %804 = vmatprep.subr.mxu0 0.0
        %805 = vmatpush2.msra.mxu0 0.0
        %806 = vmatprep.subr.mxu0 0.0
        %807 = vmatpush2.msra.mxu0 0.0
        %808 = vmatprep.subr.mxu0 0.0
        %809 = vmatpush2.msra.mxu0 0.0
        %810 = vmatprep.subr.mxu0 0.0
        %811 = vmatpush2.msra.mxu0 0.0
        %812 = vmatprep.subr.mxu0 0.0
        %813 = vmatpush2.msra.mxu0 0.0
        %814 = vmatprep.subr.mxu0 0.0
        %815 = vmatpush2.msra.mxu0 0.0
        %816 = vmatprep.subr.mxu0 0.0
        %817 = vmatpush2.msra.mxu0 0.0
        %818 = vmatprep.mubr.f32.mxu0 0.0
        %819 = vmatmul.mubr.f32.gmra.mxu0 %v750
        %v820 = vpop.f32.mrf.mxu0
        %v821 = vadd.f32 0.0, %v820
        %v822 = vpop.f32.mrf.mxu0
        %v823 = vadd.f32 0.0, %v822
        %824 = vdwg.mxu0
        %825 = vmatprep.subr.mxu0 %v619
        %826 = vmatpush1.msra.mxu0 %v618
        %827 = vmatprep.subr.mxu0 %v615
        %828 = vmatpush1.msra.mxu0 %v614
        %829 = vmatprep.subr.mxu0 %v611
        %830 = vmatpush1.msra.mxu0 %v610
        %831 = vmatprep.subr.mxu0 %v607
        %832 = vmatpush1.msra.mxu0 %v606
        %833 = vmatprep.subr.mxu0 %v603
        %834 = vmatpush1.msra.mxu0 %v602
        %835 = vmatprep.subr.mxu0 %v599
        %836 = vmatpush1.msra.mxu0 %v598
        %837 = vmatprep.subr.mxu0 %v595
        %838 = vmatpush1.msra.mxu0 %v594
        %839 = vmatprep.subr.mxu0 %v591
        %840 = vmatpush1.msra.mxu0 %v590
        %841 = vmatprep.subr.mxu0 %v587
        %842 = vmatpush1.msra.mxu0 %v586
        %843 = vmatprep.subr.mxu0 %v583
        %844 = vmatpush1.msra.mxu0 %v582
        %845 = vmatprep.subr.mxu0 %v579
        %846 = vmatpush1.msra.mxu0 %v578
        %847 = vmatprep.subr.mxu0 %v575
        %848 = vmatpush1.msra.mxu0 %v574
        %849 = vmatprep.subr.mxu0 %v571
        %850 = vmatpush1.msra.mxu0 %v570
        %851 = vmatprep.subr.mxu0 %v567
        %852 = vmatpush1.msra.mxu0 %v566
        %853 = vmatprep.subr.mxu0 %v563
        %854 = vmatpush1.msra.mxu0 %v562
        %855 = vmatprep.subr.mxu0 %v559
        %856 = vmatpush1.msra.mxu0 %v558
        %857 = vmatprep.subr.mxu0 0.0
        %858 = vmatpush2.msra.mxu0 0.0
        %859 = vmatprep.subr.mxu0 0.0
        %860 = vmatpush2.msra.mxu0 0.0
        %861 = vmatprep.subr.mxu0 0.0
        %862 = vmatpush2.msra.mxu0 0.0
        %863 = vmatprep.subr.mxu0 0.0
        %864 = vmatpush2.msra.mxu0 0.0
        %865 = vmatprep.subr.mxu0 0.0
        %866 = vmatpush2.msra.mxu0 0.0
        %867 = vmatprep.subr.mxu0 0.0
        %868 = vmatpush2.msra.mxu0 0.0
        %869 = vmatprep.subr.mxu0 0.0
        %870 = vmatpush2.msra.mxu0 0.0
        %871 = vmatprep.subr.mxu0 0.0
        %872 = vmatpush2.msra.mxu0 0.0
        %873 = vmatprep.subr.mxu0 0.0
        %874 = vmatpush2.msra.mxu0 0.0
        %875 = vmatprep.subr.mxu0 0.0
        %876 = vmatpush2.msra.mxu0 0.0
        %877 = vmatprep.subr.mxu0 0.0
        %878 = vmatpush2.msra.mxu0 0.0
        %879 = vmatprep.subr.mxu0 0.0
        %880 = vmatpush2.msra.mxu0 0.0
        %881 = vmatprep.subr.mxu0 0.0
        %882 = vmatpush2.msra.mxu0 0.0
        %883 = vmatprep.subr.mxu0 0.0
        %884 = vmatpush2.msra.mxu0 0.0
        %885 = vmatprep.subr.mxu0 0.0
        %886 = vmatpush2.msra.mxu0 0.0
        %887 = vmatprep.subr.mxu0 0.0
        %888 = vmatpush2.msra.mxu0 0.0
        %889 = vmatprep.mubr.f32.mxu0 0.0
        %890 = vmatmul.mubr.f32.gmra.mxu0 %v750
        %v891 = vpop.f32.mrf.mxu0
        %v892 = vadd.f32 0.0, %v891
        %v893 = vpop.f32.mrf.mxu0
        %v894 = vadd.f32 0.0, %v893
        %895 = vdwg.mxu0
        %v896 = vadd.f32 %v445, %v821
        %v897 = vadd.f32 %v447, %v823
        %v898 = vadd.f32 %v534, %v892
        %v899 = vadd.f32 %v536, %v894
        %v901 = vlaneseq
        %v902 = vshrl.u32 %v901, 7
        %v903 = vsub.s32 0, %v902
        %v904 = vrot.slane %v620, %v903
        %v905 = vlaneseq
        %v906 = vshrl.u32 %v905, 7
        %v907 = vsub.s32 1, %v906
        %v908 = vrot.slane %v620, %v907
        %v909 = vlaneseq
        %v910 = vshrl.u32 %v909, 7
        %v911 = vsub.s32 2, %v910
        %v912 = vrot.slane %v620, %v911
        %v913 = vlaneseq
        %v914 = vshrl.u32 %v913, 7
        %v915 = vsub.s32 3, %v914
        %v916 = vrot.slane %v620, %v915
        %v921 = vadd.f32 %v896, %v904
        %v922 = vadd.f32 %v897, %v908
        %v923 = vadd.f32 %v898, %v912
        %v924 = vadd.f32 %v899, %v916
        %v925 = vxor.u32 %v921, 2147483648
        %v926 = vmul.f32 %v925, 1.442695
        %v927 = vpow.pop %v926
        %v928 = vadd.f32 %v927, 1.0
        %v929 = vrcp.pop %v928
        %v930 = vmul.f32 1.0, %v929
        %v931 = vxor.u32 %v922, 2147483648
        %v932 = vmul.f32 %v931, 1.442695
        %v933 = vpow.pop %v932
        %v934 = vadd.f32 %v933, 1.0
        %v935 = vrcp.pop %v934
        %v936 = vmul.f32 1.0, %v935
        %v937 = vtanh.pop %v923
        %v938 = vxor.u32 %v924, 2147483648
        %v939 = vmul.f32 %v938, 1.442695
        %v940 = vpow.pop %v939
        %v941 = vadd.f32 %v940, 1.0
        %v942 = vrcp.pop %v941
        %v943 = vmul.f32 1.0, %v942
        %v944 = vmul.f32 %v936, %v751
        %v945 = vmul.f32 %v930, %v937
        %v946 = vadd.f32 %v944, %v945
        %v947 = vtanh.pop %v946
        %v948 = vmul.f32 %v943, %v947
        %v950 = vlaneseq
        %v951 = vshrl.u32 %v950, 7
        %v952 = vsub.s32 0, %v951
        %v953 = vrot.slane %v749, %v952
        %v954 = vlaneseq
        %v955 = vshrl.u32 %v954, 7
        %v956 = vsub.s32 1, %v955
        %v957 = vrot.slane %v749, %v956
        %v958 = vlaneseq
        %v959 = vshrl.u32 %v958, 7
        %v960 = vsub.s32 2, %v959
        %v961 = vrot.slane %v749, %v960
        %v962 = vlaneseq
        %v963 = vshrl.u32 %v962, 7
        %v964 = vsub.s32 3, %v963
        %v965 = vrot.slane %v749, %v964
        %970 = vmatprep.subr.mxu0 %v682
        %971 = vmatpush1.msra.mxu0 %v681
        %972 = vmatprep.subr.mxu0 %v678
        %973 = vmatpush1.msra.mxu0 %v677
        %974 = vmatprep.subr.mxu0 %v674
        %975 = vmatpush1.msra.mxu0 %v673
        %976 = vmatprep.subr.mxu0 %v670
        %977 = vmatpush1.msra.mxu0 %v669
        %978 = vmatprep.subr.mxu0 %v666
        %979 = vmatpush1.msra.mxu0 %v665
        %980 = vmatprep.subr.mxu0 %v662
        %981 = vmatpush1.msra.mxu0 %v661
        %982 = vmatprep.subr.mxu0 %v658
        %983 = vmatpush1.msra.mxu0 %v657
        %984 = vmatprep.subr.mxu0 %v654
        %985 = vmatpush1.msra.mxu0 %v653
        %986 = vmatprep.subr.mxu0 %v650
        %987 = vmatpush1.msra.mxu0 %v649
        %988 = vmatprep.subr.mxu0 %v646
        %989 = vmatpush1.msra.mxu0 %v645
        %990 = vmatprep.subr.mxu0 %v642
        %991 = vmatpush1.msra.mxu0 %v641
        %992 = vmatprep.subr.mxu0 %v638
        %993 = vmatpush1.msra.mxu0 %v637
        %994 = vmatprep.subr.mxu0 %v634
        %995 = vmatpush1.msra.mxu0 %v633
        %996 = vmatprep.subr.mxu0 %v630
        %997 = vmatpush1.msra.mxu0 %v629
        %998 = vmatprep.subr.mxu0 %v626
        %999 = vmatpush1.msra.mxu0 %v625
        %1000 = vmatprep.subr.mxu0 %v622
        %1001 = vmatpush1.msra.mxu0 %v621
        %1002 = vmatprep.subr.mxu0 %v746
        %1003 = vmatpush2.msra.mxu0 %v745
        %1004 = vmatprep.subr.mxu0 %v742
        %1005 = vmatpush2.msra.mxu0 %v741
        %1006 = vmatprep.subr.mxu0 %v738
        %1007 = vmatpush2.msra.mxu0 %v737
        %1008 = vmatprep.subr.mxu0 %v734
        %1009 = vmatpush2.msra.mxu0 %v733
        %1010 = vmatprep.subr.mxu0 %v730
        %1011 = vmatpush2.msra.mxu0 %v729
        %1012 = vmatprep.subr.mxu0 %v726
        %1013 = vmatpush2.msra.mxu0 %v725
        %1014 = vmatprep.subr.mxu0 %v722
        %1015 = vmatpush2.msra.mxu0 %v721
        %1016 = vmatprep.subr.mxu0 %v718
        %1017 = vmatpush2.msra.mxu0 %v717
        %1018 = vmatprep.subr.mxu0 %v714
        %1019 = vmatpush2.msra.mxu0 %v713
        %1020 = vmatprep.subr.mxu0 %v710
        %1021 = vmatpush2.msra.mxu0 %v709
        %1022 = vmatprep.subr.mxu0 %v706
        %1023 = vmatpush2.msra.mxu0 %v705
        %1024 = vmatprep.subr.mxu0 %v702
        %1025 = vmatpush2.msra.mxu0 %v701
        %1026 = vmatprep.subr.mxu0 %v698
        %1027 = vmatpush2.msra.mxu0 %v697
        %1028 = vmatprep.subr.mxu0 %v694
        %1029 = vmatpush2.msra.mxu0 %v693
        %1030 = vmatprep.subr.mxu0 %v690
        %1031 = vmatpush2.msra.mxu0 %v689
        %1032 = vmatprep.subr.mxu0 %v686
        %1033 = vmatpush2.msra.mxu0 %v685
        %1034 = vmatprep.mubr.f32.mxu0 %v752
        %1035 = vmatmul.mubr.f32.gmra.mxu0 %v948
        %v1036 = vpop.f32.mrf.mxu0
        %v1037 = vadd.f32 %v953, %v1036
        %v1038 = vpop.f32.mrf.mxu0
        %v1039 = vadd.f32 %v957, %v1038
        %1040 = vdwg.mxu0
        %1041 = vmatprep.subr.mxu0 %v684
        %1042 = vmatpush1.msra.mxu0 %v683
        %1043 = vmatprep.subr.mxu0 %v680
        %1044 = vmatpush1.msra.mxu0 %v679
        %1045 = vmatprep.subr.mxu0 %v676
        %1046 = vmatpush1.msra.mxu0 %v675
        %1047 = vmatprep.subr.mxu0 %v672
        %1048 = vmatpush1.msra.mxu0 %v671
        %1049 = vmatprep.subr.mxu0 %v668
        %1050 = vmatpush1.msra.mxu0 %v667
        %1051 = vmatprep.subr.mxu0 %v664
        %1052 = vmatpush1.msra.mxu0 %v663
        %1053 = vmatprep.subr.mxu0 %v660
        %1054 = vmatpush1.msra.mxu0 %v659
        %1055 = vmatprep.subr.mxu0 %v656
        %1056 = vmatpush1.msra.mxu0 %v655
        %1057 = vmatprep.subr.mxu0 %v652
        %1058 = vmatpush1.msra.mxu0 %v651
        %1059 = vmatprep.subr.mxu0 %v648
        %1060 = vmatpush1.msra.mxu0 %v647
        %1061 = vmatprep.subr.mxu0 %v644
        %1062 = vmatpush1.msra.mxu0 %v643
        %1063 = vmatprep.subr.mxu0 %v640
        %1064 = vmatpush1.msra.mxu0 %v639
        %1065 = vmatprep.subr.mxu0 %v636
        %1066 = vmatpush1.msra.mxu0 %v635
        %1067 = vmatprep.subr.mxu0 %v632
        %1068 = vmatpush1.msra.mxu0 %v631
        %1069 = vmatprep.subr.mxu0 %v628
        %1070 = vmatpush1.msra.mxu0 %v627
        %1071 = vmatprep.subr.mxu0 %v624
        %1072 = vmatpush1.msra.mxu0 %v623
        %1073 = vmatprep.subr.mxu0 %v748
        %1074 = vmatpush2.msra.mxu0 %v747
        %1075 = vmatprep.subr.mxu0 %v744
        %1076 = vmatpush2.msra.mxu0 %v743
        %1077 = vmatprep.subr.mxu0 %v740
        %1078 = vmatpush2.msra.mxu0 %v739
        %1079 = vmatprep.subr.mxu0 %v736
        %1080 = vmatpush2.msra.mxu0 %v735
        %1081 = vmatprep.subr.mxu0 %v732
        %1082 = vmatpush2.msra.mxu0 %v731
        %1083 = vmatprep.subr.mxu0 %v728
        %1084 = vmatpush2.msra.mxu0 %v727
        %1085 = vmatprep.subr.mxu0 %v724
        %1086 = vmatpush2.msra.mxu0 %v723
        %1087 = vmatprep.subr.mxu0 %v720
        %1088 = vmatpush2.msra.mxu0 %v719
        %1089 = vmatprep.subr.mxu0 %v716
        %1090 = vmatpush2.msra.mxu0 %v715
        %1091 = vmatprep.subr.mxu0 %v712
        %1092 = vmatpush2.msra.mxu0 %v711
        %1093 = vmatprep.subr.mxu0 %v708
        %1094 = vmatpush2.msra.mxu0 %v707
        %1095 = vmatprep.subr.mxu0 %v704
        %1096 = vmatpush2.msra.mxu0 %v703
        %1097 = vmatprep.subr.mxu0 %v700
        %1098 = vmatpush2.msra.mxu0 %v699
        %1099 = vmatprep.subr.mxu0 %v696
        %1100 = vmatpush2.msra.mxu0 %v695
        %1101 = vmatprep.subr.mxu0 %v692
        %1102 = vmatpush2.msra.mxu0 %v691
        %1103 = vmatprep.subr.mxu0 %v688
        %1104 = vmatpush2.msra.mxu0 %v687
        %1105 = vmatprep.mubr.f32.mxu0 %v752
        %1106 = vmatmul.mubr.f32.gmra.mxu0 %v948
        %v1107 = vpop.f32.mrf.mxu0
        %v1108 = vadd.f32 %v961, %v1107
        %v1109 = vpop.f32.mrf.mxu0
        %v1110 = vadd.f32 %v965, %v1109
        %1111 = vdwg.mxu0
        %v1112 = vxor.u32 %v1037, 2147483648
        %v1113 = vmul.f32 %v1112, 1.442695
        %v1114 = vpow.pop %v1113
        %v1115 = vadd.f32 %v1114, 1.0
        %v1116 = vrcp.pop %v1115
        %v1117 = vmul.f32 1.0, %v1116
        %v1118 = vxor.u32 %v1039, 2147483648
        %v1119 = vmul.f32 %v1118, 1.442695
        %v1120 = vpow.pop %v1119
        %v1121 = vadd.f32 %v1120, 1.0
        %v1122 = vrcp.pop %v1121
        %v1123 = vmul.f32 1.0, %v1122
        %v1124 = vtanh.pop %v1108
        %v1125 = vxor.u32 %v1110, 2147483648
        %v1126 = vmul.f32 %v1125, 1.442695
        %v1127 = vpow.pop %v1126
        %v1128 = vadd.f32 %v1127, 1.0
        %v1129 = vrcp.pop %v1128
        %v1130 = vmul.f32 1.0, %v1129
        %v1131 = vmul.f32 %v1123, %v753
        %v1132 = vmul.f32 %v1117, %v1124
        %v1133 = vadd.f32 %v1131, %v1132
        %v1134 = vtanh.pop %v1133
        %v1135 = vmul.f32 %v1130, %v1134
        %1136 = vmatprep.subr.mxu0 %v617
        %1137 = vmatpush1.msra.mxu0 %v616
        %1138 = vmatprep.subr.mxu0 %v613
        %1139 = vmatpush1.msra.mxu0 %v612
        %1140 = vmatprep.subr.mxu0 %v609
        %1141 = vmatpush1.msra.mxu0 %v608
        %1142 = vmatprep.subr.mxu0 %v605
        %1143 = vmatpush1.msra.mxu0 %v604
        %1144 = vmatprep.subr.mxu0 %v601
        %1145 = vmatpush1.msra.mxu0 %v600
        %1146 = vmatprep.subr.mxu0 %v597
        %1147 = vmatpush1.msra.mxu0 %v596
        %1148 = vmatprep.subr.mxu0 %v593
        %1149 = vmatpush1.msra.mxu0 %v592
        %1150 = vmatprep.subr.mxu0 %v589
        %1151 = vmatpush1.msra.mxu0 %v588
        %1152 = vmatprep.subr.mxu0 %v585
        %1153 = vmatpush1.msra.mxu0 %v584
        %1154 = vmatprep.subr.mxu0 %v581
        %1155 = vmatpush1.msra.mxu0 %v580
        %1156 = vmatprep.subr.mxu0 %v577
        %1157 = vmatpush1.msra.mxu0 %v576
        %1158 = vmatprep.subr.mxu0 %v573
        %1159 = vmatpush1.msra.mxu0 %v572
        %1160 = vmatprep.subr.mxu0 %v569
        %1161 = vmatpush1.msra.mxu0 %v568
        %1162 = vmatprep.subr.mxu0 %v565
        %1163 = vmatpush1.msra.mxu0 %v564
        %1164 = vmatprep.subr.mxu0 %v561
        %1165 = vmatpush1.msra.mxu0 %v560
        %1166 = vmatprep.subr.mxu0 %v557
        %1167 = vmatpush1.msra.mxu0 %v556
        %1168 = vmatprep.subr.mxu0 0.0
        %1169 = vmatpush2.msra.mxu0 0.0
        %1170 = vmatprep.subr.mxu0 0.0
        %1171 = vmatpush2.msra.mxu0 0.0
        %1172 = vmatprep.subr.mxu0 0.0
        %1173 = vmatpush2.msra.mxu0 0.0
        %1174 = vmatprep.subr.mxu0 0.0
        %1175 = vmatpush2.msra.mxu0 0.0
        %1176 = vmatprep.subr.mxu0 0.0
        %1177 = vmatpush2.msra.mxu0 0.0
        %1178 = vmatprep.subr.mxu0 0.0
        %1179 = vmatpush2.msra.mxu0 0.0
        %1180 = vmatprep.subr.mxu0 0.0
        %1181 = vmatpush2.msra.mxu0 0.0
        %1182 = vmatprep.subr.mxu0 0.0
        %1183 = vmatpush2.msra.mxu0 0.0
        %1184 = vmatprep.subr.mxu0 0.0
        %1185 = vmatpush2.msra.mxu0 0.0
        %1186 = vmatprep.subr.mxu0 0.0
        %1187 = vmatpush2.msra.mxu0 0.0
        %1188 = vmatprep.subr.mxu0 0.0
        %1189 = vmatpush2.msra.mxu0 0.0
        %1190 = vmatprep.subr.mxu0 0.0
        %1191 = vmatpush2.msra.mxu0 0.0
        %1192 = vmatprep.subr.mxu0 0.0
        %1193 = vmatpush2.msra.mxu0 0.0
        %1194 = vmatprep.subr.mxu0 0.0
        %1195 = vmatpush2.msra.mxu0 0.0
        %1196 = vmatprep.subr.mxu0 0.0
        %1197 = vmatpush2.msra.mxu0 0.0
        %1198 = vmatprep.subr.mxu0 0.0
        %1199 = vmatpush2.msra.mxu0 0.0
        %1200 = vmatprep.mubr.f32.mxu0 0.0
        %1201 = vmatmul.mubr.f32.gmra.mxu0 %v948
        %v1202 = vpop.f32.mrf.mxu0
        %v1203 = vadd.f32 0.0, %v1202
        %v1204 = vpop.f32.mrf.mxu0
        %v1205 = vadd.f32 0.0, %v1204
        %1206 = vdwg.mxu0
        %1207 = vmatprep.subr.mxu0 %v619
        %1208 = vmatpush1.msra.mxu0 %v618
        %1209 = vmatprep.subr.mxu0 %v615
        %1210 = vmatpush1.msra.mxu0 %v614
        %1211 = vmatprep.subr.mxu0 %v611
        %1212 = vmatpush1.msra.mxu0 %v610
        %1213 = vmatprep.subr.mxu0 %v607
        %1214 = vmatpush1.msra.mxu0 %v606
        %1215 = vmatprep.subr.mxu0 %v603
        %1216 = vmatpush1.msra.mxu0 %v602
        %1217 = vmatprep.subr.mxu0 %v599
        %1218 = vmatpush1.msra.mxu0 %v598
        %1219 = vmatprep.subr.mxu0 %v595
        %1220 = vmatpush1.msra.mxu0 %v594
        %1221 = vmatprep.subr.mxu0 %v591
        %1222 = vmatpush1.msra.mxu0 %v590
        %1223 = vmatprep.subr.mxu0 %v587
        %1224 = vmatpush1.msra.mxu0 %v586
        %1225 = vmatprep.subr.mxu0 %v583
        %1226 = vmatpush1.msra.mxu0 %v582
        %1227 = vmatprep.subr.mxu0 %v579
        %1228 = vmatpush1.msra.mxu0 %v578
        %1229 = vmatprep.subr.mxu0 %v575
        %1230 = vmatpush1.msra.mxu0 %v574
        %1231 = vmatprep.subr.mxu0 %v571
        %1232 = vmatpush1.msra.mxu0 %v570
        %1233 = vmatprep.subr.mxu0 %v567
        %1234 = vmatpush1.msra.mxu0 %v566
        %1235 = vmatprep.subr.mxu0 %v563
        %1236 = vmatpush1.msra.mxu0 %v562
        %1237 = vmatprep.subr.mxu0 %v559
        %1238 = vmatpush1.msra.mxu0 %v558
        %1239 = vmatprep.subr.mxu0 0.0
        %1240 = vmatpush2.msra.mxu0 0.0
        %1241 = vmatprep.subr.mxu0 0.0
        %1242 = vmatpush2.msra.mxu0 0.0
        %1243 = vmatprep.subr.mxu0 0.0
        %1244 = vmatpush2.msra.mxu0 0.0
        %1245 = vmatprep.subr.mxu0 0.0
        %1246 = vmatpush2.msra.mxu0 0.0
        %1247 = vmatprep.subr.mxu0 0.0
        %1248 = vmatpush2.msra.mxu0 0.0
        %1249 = vmatprep.subr.mxu0 0.0
        %1250 = vmatpush2.msra.mxu0 0.0
        %1251 = vmatprep.subr.mxu0 0.0
        %1252 = vmatpush2.msra.mxu0 0.0
        %1253 = vmatprep.subr.mxu0 0.0
        %1254 = vmatpush2.msra.mxu0 0.0
        %1255 = vmatprep.subr.mxu0 0.0
        %1256 = vmatpush2.msra.mxu0 0.0
        %1257 = vmatprep.subr.mxu0 0.0
        %1258 = vmatpush2.msra.mxu0 0.0
        %1259 = vmatprep.subr.mxu0 0.0
        %1260 = vmatpush2.msra.mxu0 0.0
        %1261 = vmatprep.subr.mxu0 0.0
        %1262 = vmatpush2.msra.mxu0 0.0
        %1263 = vmatprep.subr.mxu0 0.0
        %1264 = vmatpush2.msra.mxu0 0.0
        %1265 = vmatprep.subr.mxu0 0.0
        %1266 = vmatpush2.msra.mxu0 0.0
        %1267 = vmatprep.subr.mxu0 0.0
        %1268 = vmatpush2.msra.mxu0 0.0
        %1269 = vmatprep.subr.mxu0 0.0
        %1270 = vmatpush2.msra.mxu0 0.0
        %1271 = vmatprep.mubr.f32.mxu0 0.0
        %1272 = vmatmul.mubr.f32.gmra.mxu0 %v948
        %v1273 = vpop.f32.mrf.mxu0
        %v1274 = vadd.f32 0.0, %v1273
        %v1275 = vpop.f32.mrf.mxu0
        %v1276 = vadd.f32 0.0, %v1275
        %1277 = vdwg.mxu0
        %v1278 = vadd.f32 %v451, %v1203
        %v1279 = vadd.f32 %v453, %v1205
        %v1280 = vadd.f32 %v540, %v1274
        %v1281 = vadd.f32 %v542, %v1276
        %v1282 = vadd.f32 %v1278, %v904
        %v1283 = vadd.f32 %v1279, %v908
        %v1284 = vadd.f32 %v1280, %v912
        %v1285 = vadd.f32 %v1281, %v916
        %v1286 = vxor.u32 %v1282, 2147483648
        %v1287 = vmul.f32 %v1286, 1.442695
        %v1288 = vpow.pop %v1287
        %v1289 = vadd.f32 %v1288, 1.0
        %v1290 = vrcp.pop %v1289
        %v1291 = vmul.f32 1.0, %v1290
        %v1292 = vxor.u32 %v1283, 2147483648
        %v1293 = vmul.f32 %v1292, 1.442695
        %v1294 = vpow.pop %v1293
        %v1295 = vadd.f32 %v1294, 1.0
        %v1296 = vrcp.pop %v1295
        %v1297 = vmul.f32 1.0, %v1296
        %v1298 = vtanh.pop %v1284
        %v1299 = vxor.u32 %v1285, 2147483648
        %v1300 = vmul.f32 %v1299, 1.442695
        %v1301 = vpow.pop %v1300
        %v1302 = vadd.f32 %v1301, 1.0
        %v1303 = vrcp.pop %v1302
        %v1304 = vmul.f32 1.0, %v1303
        %v1305 = vmul.f32 %v1297, %v946
        %v1306 = vmul.f32 %v1291, %v1298
        %v1307 = vadd.f32 %v1305, %v1306
        %v1308 = vtanh.pop %v1307
        %v1309 = vmul.f32 %v1304, %v1308
        %1310 = vmatprep.subr.mxu0 %v682
        %1311 = vmatpush1.msra.mxu0 %v681
        %1312 = vmatprep.subr.mxu0 %v678
        %1313 = vmatpush1.msra.mxu0 %v677
        %1314 = vmatprep.subr.mxu0 %v674
        %1315 = vmatpush1.msra.mxu0 %v673
        %1316 = vmatprep.subr.mxu0 %v670
        %1317 = vmatpush1.msra.mxu0 %v669
        %1318 = vmatprep.subr.mxu0 %v666
        %1319 = vmatpush1.msra.mxu0 %v665
        %1320 = vmatprep.subr.mxu0 %v662
        %1321 = vmatpush1.msra.mxu0 %v661
        %1322 = vmatprep.subr.mxu0 %v658
        %1323 = vmatpush1.msra.mxu0 %v657
        %1324 = vmatprep.subr.mxu0 %v654
        %1325 = vmatpush1.msra.mxu0 %v653
        %1326 = vmatprep.subr.mxu0 %v650
        %1327 = vmatpush1.msra.mxu0 %v649
        %1328 = vmatprep.subr.mxu0 %v646
        %1329 = vmatpush1.msra.mxu0 %v645
        %1330 = vmatprep.subr.mxu0 %v642
        %1331 = vmatpush1.msra.mxu0 %v641
        %1332 = vmatprep.subr.mxu0 %v638
        %1333 = vmatpush1.msra.mxu0 %v637
        %1334 = vmatprep.subr.mxu0 %v634
        %1335 = vmatpush1.msra.mxu0 %v633
        %1336 = vmatprep.subr.mxu0 %v630
        %1337 = vmatpush1.msra.mxu0 %v629
        %1338 = vmatprep.subr.mxu0 %v626
        %1339 = vmatpush1.msra.mxu0 %v625
        %1340 = vmatprep.subr.mxu0 %v622
        %1341 = vmatpush1.msra.mxu0 %v621
        %1342 = vmatprep.subr.mxu0 %v746
        %1343 = vmatpush2.msra.mxu0 %v745
        %1344 = vmatprep.subr.mxu0 %v742
        %1345 = vmatpush2.msra.mxu0 %v741
        %1346 = vmatprep.subr.mxu0 %v738
        %1347 = vmatpush2.msra.mxu0 %v737
        %1348 = vmatprep.subr.mxu0 %v734
        %1349 = vmatpush2.msra.mxu0 %v733
        %1350 = vmatprep.subr.mxu0 %v730
        %1351 = vmatpush2.msra.mxu0 %v729
        %1352 = vmatprep.subr.mxu0 %v726
        %1353 = vmatpush2.msra.mxu0 %v725
        %1354 = vmatprep.subr.mxu0 %v722
        %1355 = vmatpush2.msra.mxu0 %v721
        %1356 = vmatprep.subr.mxu0 %v718
        %1357 = vmatpush2.msra.mxu0 %v717
        %1358 = vmatprep.subr.mxu0 %v714
        %1359 = vmatpush2.msra.mxu0 %v713
        %1360 = vmatprep.subr.mxu0 %v710
        %1361 = vmatpush2.msra.mxu0 %v709
        %1362 = vmatprep.subr.mxu0 %v706
        %1363 = vmatpush2.msra.mxu0 %v705
        %1364 = vmatprep.subr.mxu0 %v702
        %1365 = vmatpush2.msra.mxu0 %v701
        %1366 = vmatprep.subr.mxu0 %v698
        %1367 = vmatpush2.msra.mxu0 %v697
        %1368 = vmatprep.subr.mxu0 %v694
        %1369 = vmatpush2.msra.mxu0 %v693
        %1370 = vmatprep.subr.mxu0 %v690
        %1371 = vmatpush2.msra.mxu0 %v689
        %1372 = vmatprep.subr.mxu0 %v686
        %1373 = vmatpush2.msra.mxu0 %v685
        %1374 = vmatprep.mubr.f32.mxu0 %v1135
        %1375 = vmatmul.mubr.f32.gmra.mxu0 %v1309
        %v1376 = vpop.f32.mrf.mxu0
        %v1377 = vadd.f32 %v953, %v1376
        %v1378 = vpop.f32.mrf.mxu0
        %v1379 = vadd.f32 %v957, %v1378
        %1380 = vdwg.mxu0
        %1381 = vmatprep.subr.mxu0 %v684
        %1382 = vmatpush1.msra.mxu0 %v683
        %1383 = vmatprep.subr.mxu0 %v680
        %1384 = vmatpush1.msra.mxu0 %v679
        %1385 = vmatprep.subr.mxu0 %v676
        %1386 = vmatpush1.msra.mxu0 %v675
        %1387 = vmatprep.subr.mxu0 %v672
        %1388 = vmatpush1.msra.mxu0 %v671
        %1389 = vmatprep.subr.mxu0 %v668
        %1390 = vmatpush1.msra.mxu0 %v667
        %1391 = vmatprep.subr.mxu0 %v664
        %1392 = vmatpush1.msra.mxu0 %v663
        %1393 = vmatprep.subr.mxu0 %v660
        %1394 = vmatpush1.msra.mxu0 %v659
        %1395 = vmatprep.subr.mxu0 %v656
        %1396 = vmatpush1.msra.mxu0 %v655
        %1397 = vmatprep.subr.mxu0 %v652
        %1398 = vmatpush1.msra.mxu0 %v651
        %1399 = vmatprep.subr.mxu0 %v648
        %1400 = vmatpush1.msra.mxu0 %v647
        %1401 = vmatprep.subr.mxu0 %v644
        %1402 = vmatpush1.msra.mxu0 %v643
        %1403 = vmatprep.subr.mxu0 %v640
        %1404 = vmatpush1.msra.mxu0 %v639
        %1405 = vmatprep.subr.mxu0 %v636
        %1406 = vmatpush1.msra.mxu0 %v635
        %1407 = vmatprep.subr.mxu0 %v632
        %1408 = vmatpush1.msra.mxu0 %v631
        %1409 = vmatprep.subr.mxu0 %v628
        %1410 = vmatpush1.msra.mxu0 %v627
        %1411 = vmatprep.subr.mxu0 %v624
        %1412 = vmatpush1.msra.mxu0 %v623
        %1413 = vmatprep.subr.mxu0 %v748
        %1414 = vmatpush2.msra.mxu0 %v747
        %1415 = vmatprep.subr.mxu0 %v744
        %1416 = vmatpush2.msra.mxu0 %v743
        %1417 = vmatprep.subr.mxu0 %v740
        %1418 = vmatpush2.msra.mxu0 %v739
        %1419 = vmatprep.subr.mxu0 %v736
        %1420 = vmatpush2.msra.mxu0 %v735
        %1421 = vmatprep.subr.mxu0 %v732
        %1422 = vmatpush2.msra.mxu0 %v731
        %1423 = vmatprep.subr.mxu0 %v728
        %1424 = vmatpush2.msra.mxu0 %v727
        %1425 = vmatprep.subr.mxu0 %v724
        %1426 = vmatpush2.msra.mxu0 %v723
        %1427 = vmatprep.subr.mxu0 %v720
        %1428 = vmatpush2.msra.mxu0 %v719
        %1429 = vmatprep.subr.mxu0 %v716
        %1430 = vmatpush2.msra.mxu0 %v715
        %1431 = vmatprep.subr.mxu0 %v712
        %1432 = vmatpush2.msra.mxu0 %v711
        %1433 = vmatprep.subr.mxu0 %v708
        %1434 = vmatpush2.msra.mxu0 %v707
        %1435 = vmatprep.subr.mxu0 %v704
        %1436 = vmatpush2.msra.mxu0 %v703
        %1437 = vmatprep.subr.mxu0 %v700
        %1438 = vmatpush2.msra.mxu0 %v699
        %1439 = vmatprep.subr.mxu0 %v696
        %1440 = vmatpush2.msra.mxu0 %v695
        %1441 = vmatprep.subr.mxu0 %v692
        %1442 = vmatpush2.msra.mxu0 %v691
        %1443 = vmatprep.subr.mxu0 %v688
        %1444 = vmatpush2.msra.mxu0 %v687
        %1445 = vmatprep.mubr.f32.mxu0 %v1135
        %1446 = vmatmul.mubr.f32.gmra.mxu0 %v1309
        %v1447 = vpop.f32.mrf.mxu0
        %v1448 = vadd.f32 %v961, %v1447
        %v1449 = vpop.f32.mrf.mxu0
        %v1450 = vadd.f32 %v965, %v1449
        %1451 = vdwg.mxu0
        %v1452 = vxor.u32 %v1377, 2147483648
        %v1453 = vmul.f32 %v1452, 1.442695
        %v1454 = vpow.pop %v1453
        %v1455 = vadd.f32 %v1454, 1.0
        %v1456 = vrcp.pop %v1455
        %v1457 = vmul.f32 1.0, %v1456
        %v1458 = vxor.u32 %v1379, 2147483648
        %v1459 = vmul.f32 %v1458, 1.442695
        %v1460 = vpow.pop %v1459
        %v1461 = vadd.f32 %v1460, 1.0
        %v1462 = vrcp.pop %v1461
        %v1463 = vmul.f32 1.0, %v1462
        %v1464 = vtanh.pop %v1448
        %v1465 = vxor.u32 %v1450, 2147483648
        %v1466 = vmul.f32 %v1465, 1.442695
        %v1467 = vpow.pop %v1466
        %v1468 = vadd.f32 %v1467, 1.0
        %v1469 = vrcp.pop %v1468
        %v1470 = vmul.f32 1.0, %v1469
        %v1471 = vmul.f32 %v1463, %v1133
        %v1472 = vmul.f32 %v1457, %v1464
        %v1473 = vadd.f32 %v1471, %v1472
        %v1474 = vtanh.pop %v1473
        %v1475 = vmul.f32 %v1470, %v1474
        %1476 = vmatprep.subr.mxu0 %v617
        %1477 = vmatpush1.msra.mxu0 %v616
        %1478 = vmatprep.subr.mxu0 %v613
        %1479 = vmatpush1.msra.mxu0 %v612
        %1480 = vmatprep.subr.mxu0 %v609
        %1481 = vmatpush1.msra.mxu0 %v608
        %1482 = vmatprep.subr.mxu0 %v605
        %1483 = vmatpush1.msra.mxu0 %v604
        %1484 = vmatprep.subr.mxu0 %v601
        %1485 = vmatpush1.msra.mxu0 %v600
        %1486 = vmatprep.subr.mxu0 %v597
        %1487 = vmatpush1.msra.mxu0 %v596
        %1488 = vmatprep.subr.mxu0 %v593
        %1489 = vmatpush1.msra.mxu0 %v592
        %1490 = vmatprep.subr.mxu0 %v589
        %1491 = vmatpush1.msra.mxu0 %v588
        %1492 = vmatprep.subr.mxu0 %v585
        %1493 = vmatpush1.msra.mxu0 %v584
        %1494 = vmatprep.subr.mxu0 %v581
        %1495 = vmatpush1.msra.mxu0 %v580
        %1496 = vmatprep.subr.mxu0 %v577
        %1497 = vmatpush1.msra.mxu0 %v576
        %1498 = vmatprep.subr.mxu0 %v573
        %1499 = vmatpush1.msra.mxu0 %v572
        %1500 = vmatprep.subr.mxu0 %v569
        %1501 = vmatpush1.msra.mxu0 %v568
        %1502 = vmatprep.subr.mxu0 %v565
        %1503 = vmatpush1.msra.mxu0 %v564
        %1504 = vmatprep.subr.mxu0 %v561
        %1505 = vmatpush1.msra.mxu0 %v560
        %1506 = vmatprep.subr.mxu0 %v557
        %1507 = vmatpush1.msra.mxu0 %v556
        %1508 = vmatprep.subr.mxu0 0.0
        %1509 = vmatpush2.msra.mxu0 0.0
        %1510 = vmatprep.subr.mxu0 0.0
        %1511 = vmatpush2.msra.mxu0 0.0
        %1512 = vmatprep.subr.mxu0 0.0
        %1513 = vmatpush2.msra.mxu0 0.0
        %1514 = vmatprep.subr.mxu0 0.0
        %1515 = vmatpush2.msra.mxu0 0.0
        %1516 = vmatprep.subr.mxu0 0.0
        %1517 = vmatpush2.msra.mxu0 0.0
        %1518 = vmatprep.subr.mxu0 0.0
        %1519 = vmatpush2.msra.mxu0 0.0
        %1520 = vmatprep.subr.mxu0 0.0
        %1521 = vmatpush2.msra.mxu0 0.0
        %1522 = vmatprep.subr.mxu0 0.0
        %1523 = vmatpush2.msra.mxu0 0.0
        %1524 = vmatprep.subr.mxu0 0.0
        %1525 = vmatpush2.msra.mxu0 0.0
        %1526 = vmatprep.subr.mxu0 0.0
        %1527 = vmatpush2.msra.mxu0 0.0
        %1528 = vmatprep.subr.mxu0 0.0
        %1529 = vmatpush2.msra.mxu0 0.0
        %1530 = vmatprep.subr.mxu0 0.0
        %1531 = vmatpush2.msra.mxu0 0.0
        %1532 = vmatprep.subr.mxu0 0.0
        %1533 = vmatpush2.msra.mxu0 0.0
        %1534 = vmatprep.subr.mxu0 0.0
        %1535 = vmatpush2.msra.mxu0 0.0
        %1536 = vmatprep.subr.mxu0 0.0
        %1537 = vmatpush2.msra.mxu0 0.0
        %1538 = vmatprep.subr.mxu0 0.0
        %1539 = vmatpush2.msra.mxu0 0.0
        %1540 = vmatprep.mubr.f32.mxu0 0.0
        %1541 = vmatmul.mubr.f32.gmra.mxu0 %v1309
        %v1542 = vpop.f32.mrf.mxu0
        %v1543 = vadd.f32 0.0, %v1542
        %v1544 = vpop.f32.mrf.mxu0
        %v1545 = vadd.f32 0.0, %v1544
        %1546 = vdwg.mxu0
        %1547 = vmatprep.subr.mxu0 %v619
        %1548 = vmatpush1.msra.mxu0 %v618
        %1549 = vmatprep.subr.mxu0 %v615
        %1550 = vmatpush1.msra.mxu0 %v614
        %1551 = vmatprep.subr.mxu0 %v611
        %1552 = vmatpush1.msra.mxu0 %v610
        %1553 = vmatprep.subr.mxu0 %v607
        %1554 = vmatpush1.msra.mxu0 %v606
        %1555 = vmatprep.subr.mxu0 %v603
        %1556 = vmatpush1.msra.mxu0 %v602
        %1557 = vmatprep.subr.mxu0 %v599
        %1558 = vmatpush1.msra.mxu0 %v598
        %1559 = vmatprep.subr.mxu0 %v595
        %1560 = vmatpush1.msra.mxu0 %v594
        %1561 = vmatprep.subr.mxu0 %v591
        %1562 = vmatpush1.msra.mxu0 %v590
        %1563 = vmatprep.subr.mxu0 %v587
        %1564 = vmatpush1.msra.mxu0 %v586
        %1565 = vmatprep.subr.mxu0 %v583
        %1566 = vmatpush1.msra.mxu0 %v582
        %1567 = vmatprep.subr.mxu0 %v579
        %1568 = vmatpush1.msra.mxu0 %v578
        %1569 = vmatprep.subr.mxu0 %v575
        %1570 = vmatpush1.msra.mxu0 %v574
        %1571 = vmatprep.subr.mxu0 %v571
        %1572 = vmatpush1.msra.mxu0 %v570
        %1573 = vmatprep.subr.mxu0 %v567
        %1574 = vmatpush1.msra.mxu0 %v566
        %1575 = vmatprep.subr.mxu0 %v563
        %1576 = vmatpush1.msra.mxu0 %v562
        %1577 = vmatprep.subr.mxu0 %v559
        %1578 = vmatpush1.msra.mxu0 %v558
        %1579 = vmatprep.subr.mxu0 0.0
        %1580 = vmatpush2.msra.mxu0 0.0
        %1581 = vmatprep.subr.mxu0 0.0
        %1582 = vmatpush2.msra.mxu0 0.0
        %1583 = vmatprep.subr.mxu0 0.0
        %1584 = vmatpush2.msra.mxu0 0.0
        %1585 = vmatprep.subr.mxu0 0.0
        %1586 = vmatpush2.msra.mxu0 0.0
        %1587 = vmatprep.subr.mxu0 0.0
        %1588 = vmatpush2.msra.mxu0 0.0
        %1589 = vmatprep.subr.mxu0 0.0
        %1590 = vmatpush2.msra.mxu0 0.0
        %1591 = vmatprep.subr.mxu0 0.0
        %1592 = vmatpush2.msra.mxu0 0.0
        %1593 = vmatprep.subr.mxu0 0.0
        %1594 = vmatpush2.msra.mxu0 0.0
        %1595 = vmatprep.subr.mxu0 0.0
        %1596 = vmatpush2.msra.mxu0 0.0
        %1597 = vmatprep.subr.mxu0 0.0
        %1598 = vmatpush2.msra.mxu0 0.0
        %1599 = vmatprep.subr.mxu0 0.0
        %1600 = vmatpush2.msra.mxu0 0.0
        %1601 = vmatprep.subr.mxu0 0.0
        %1602 = vmatpush2.msra.mxu0 0.0
        %1603 = vmatprep.subr.mxu0 0.0
        %1604 = vmatpush2.msra.mxu0 0.0
        %1605 = vmatprep.subr.mxu0 0.0
        %1606 = vmatpush2.msra.mxu0 0.0
        %1607 = vmatprep.subr.mxu0 0.0
        %1608 = vmatpush2.msra.mxu0 0.0
        %1609 = vmatprep.subr.mxu0 0.0
        %1610 = vmatpush2.msra.mxu0 0.0
        %1611 = vmatprep.mubr.f32.mxu0 0.0
        %1612 = vmatmul.mubr.f32.gmra.mxu0 %v1309
        %v1613 = vpop.f32.mrf.mxu0
        %v1614 = vadd.f32 0.0, %v1613
        %v1615 = vpop.f32.mrf.mxu0
        %v1616 = vadd.f32 0.0, %v1615
        %1617 = vdwg.mxu0
        %v1618 = vadd.f32 %v457, %v1543
        %v1619 = vadd.f32 %v459, %v1545
        %v1620 = vadd.f32 %v546, %v1614
        %v1621 = vadd.f32 %v548, %v1616
        %v1622 = vadd.f32 %v1618, %v904
        %v1623 = vadd.f32 %v1619, %v908
        %v1624 = vadd.f32 %v1620, %v912
        %v1625 = vadd.f32 %v1621, %v916
        %v1626 = vxor.u32 %v1622, 2147483648
        %v1627 = vmul.f32 %v1626, 1.442695
        %v1628 = vpow.pop %v1627
        %v1629 = vadd.f32 %v1628, 1.0
        %v1630 = vrcp.pop %v1629
        %v1631 = vmul.f32 1.0, %v1630
        %v1632 = vxor.u32 %v1623, 2147483648
        %v1633 = vmul.f32 %v1632, 1.442695
        %v1634 = vpow.pop %v1633
        %v1635 = vadd.f32 %v1634, 1.0
        %v1636 = vrcp.pop %v1635
        %v1637 = vmul.f32 1.0, %v1636
        %v1638 = vtanh.pop %v1624
        %v1639 = vxor.u32 %v1625, 2147483648
        %v1640 = vmul.f32 %v1639, 1.442695
        %v1641 = vpow.pop %v1640
        %v1642 = vadd.f32 %v1641, 1.0
        %v1643 = vrcp.pop %v1642
        %v1644 = vmul.f32 1.0, %v1643
        %v1645 = vmul.f32 %v1637, %v1307
        %v1646 = vmul.f32 %v1631, %v1638
        %v1647 = vadd.f32 %v1645, %v1646
        %v1648 = vtanh.pop %v1647
        %v1649 = vmul.f32 %v1644, %v1648
        %1650 = vmatprep.subr.mxu0 %v682
        %1651 = vmatpush1.msra.mxu0 %v681
        %1652 = vmatprep.subr.mxu0 %v678
        %1653 = vmatpush1.msra.mxu0 %v677
        %1654 = vmatprep.subr.mxu0 %v674
        %1655 = vmatpush1.msra.mxu0 %v673
        %1656 = vmatprep.subr.mxu0 %v670
        %1657 = vmatpush1.msra.mxu0 %v669
        %1658 = vmatprep.subr.mxu0 %v666
        %1659 = vmatpush1.msra.mxu0 %v665
        %1660 = vmatprep.subr.mxu0 %v662
        %1661 = vmatpush1.msra.mxu0 %v661
        %1662 = vmatprep.subr.mxu0 %v658
        %1663 = vmatpush1.msra.mxu0 %v657
        %1664 = vmatprep.subr.mxu0 %v654
        %1665 = vmatpush1.msra.mxu0 %v653
        %1666 = vmatprep.subr.mxu0 %v650
        %1667 = vmatpush1.msra.mxu0 %v649
        %1668 = vmatprep.subr.mxu0 %v646
        %1669 = vmatpush1.msra.mxu0 %v645
        %1670 = vmatprep.subr.mxu0 %v642
        %1671 = vmatpush1.msra.mxu0 %v641
        %1672 = vmatprep.subr.mxu0 %v638
        %1673 = vmatpush1.msra.mxu0 %v637
        %1674 = vmatprep.subr.mxu0 %v634
        %1675 = vmatpush1.msra.mxu0 %v633
        %1676 = vmatprep.subr.mxu0 %v630
        %1677 = vmatpush1.msra.mxu0 %v629
        %1678 = vmatprep.subr.mxu0 %v626
        %1679 = vmatpush1.msra.mxu0 %v625
        %1680 = vmatprep.subr.mxu0 %v622
        %1681 = vmatpush1.msra.mxu0 %v621
        %1682 = vmatprep.subr.mxu0 %v746
        %1683 = vmatpush2.msra.mxu0 %v745
        %1684 = vmatprep.subr.mxu0 %v742
        %1685 = vmatpush2.msra.mxu0 %v741
        %1686 = vmatprep.subr.mxu0 %v738
        %1687 = vmatpush2.msra.mxu0 %v737
        %1688 = vmatprep.subr.mxu0 %v734
        %1689 = vmatpush2.msra.mxu0 %v733
        %1690 = vmatprep.subr.mxu0 %v730
        %1691 = vmatpush2.msra.mxu0 %v729
        %1692 = vmatprep.subr.mxu0 %v726
        %1693 = vmatpush2.msra.mxu0 %v725
        %1694 = vmatprep.subr.mxu0 %v722
        %1695 = vmatpush2.msra.mxu0 %v721
        %1696 = vmatprep.subr.mxu0 %v718
        %1697 = vmatpush2.msra.mxu0 %v717
        %1698 = vmatprep.subr.mxu0 %v714
        %1699 = vmatpush2.msra.mxu0 %v713
        %1700 = vmatprep.subr.mxu0 %v710
        %1701 = vmatpush2.msra.mxu0 %v709
        %1702 = vmatprep.subr.mxu0 %v706
        %1703 = vmatpush2.msra.mxu0 %v705
        %1704 = vmatprep.subr.mxu0 %v702
        %1705 = vmatpush2.msra.mxu0 %v701
        %1706 = vmatprep.subr.mxu0 %v698
        %1707 = vmatpush2.msra.mxu0 %v697
        %1708 = vmatprep.subr.mxu0 %v694
        %1709 = vmatpush2.msra.mxu0 %v693
        %1710 = vmatprep.subr.mxu0 %v690
        %1711 = vmatpush2.msra.mxu0 %v689
        %1712 = vmatprep.subr.mxu0 %v686
        %1713 = vmatpush2.msra.mxu0 %v685
        %1714 = vmatprep.mubr.f32.mxu0 %v1475
        %1715 = vmatmul.mubr.f32.gmra.mxu0 %v1649
        %v1716 = vpop.f32.mrf.mxu0
        %v1717 = vadd.f32 %v953, %v1716
        %v1718 = vpop.f32.mrf.mxu0
        %v1719 = vadd.f32 %v957, %v1718
        %1720 = vdwg.mxu0
        %1721 = vmatprep.subr.mxu0 %v684
        %1722 = vmatpush1.msra.mxu0 %v683
        %1723 = vmatprep.subr.mxu0 %v680
        %1724 = vmatpush1.msra.mxu0 %v679
        %1725 = vmatprep.subr.mxu0 %v676
        %1726 = vmatpush1.msra.mxu0 %v675
        %1727 = vmatprep.subr.mxu0 %v672
        %1728 = vmatpush1.msra.mxu0 %v671
        %1729 = vmatprep.subr.mxu0 %v668
        %1730 = vmatpush1.msra.mxu0 %v667
        %1731 = vmatprep.subr.mxu0 %v664
        %1732 = vmatpush1.msra.mxu0 %v663
        %1733 = vmatprep.subr.mxu0 %v660
        %1734 = vmatpush1.msra.mxu0 %v659
        %1735 = vmatprep.subr.mxu0 %v656
        %1736 = vmatpush1.msra.mxu0 %v655
        %1737 = vmatprep.subr.mxu0 %v652
        %1738 = vmatpush1.msra.mxu0 %v651
        %1739 = vmatprep.subr.mxu0 %v648
        %1740 = vmatpush1.msra.mxu0 %v647
        %1741 = vmatprep.subr.mxu0 %v644
        %1742 = vmatpush1.msra.mxu0 %v643
        %1743 = vmatprep.subr.mxu0 %v640
        %1744 = vmatpush1.msra.mxu0 %v639
        %1745 = vmatprep.subr.mxu0 %v636
        %1746 = vmatpush1.msra.mxu0 %v635
        %1747 = vmatprep.subr.mxu0 %v632
        %1748 = vmatpush1.msra.mxu0 %v631
        %1749 = vmatprep.subr.mxu0 %v628
        %1750 = vmatpush1.msra.mxu0 %v627
        %1751 = vmatprep.subr.mxu0 %v624
        %1752 = vmatpush1.msra.mxu0 %v623
        %1753 = vmatprep.subr.mxu0 %v748
        %1754 = vmatpush2.msra.mxu0 %v747
        %1755 = vmatprep.subr.mxu0 %v744
        %1756 = vmatpush2.msra.mxu0 %v743
        %1757 = vmatprep.subr.mxu0 %v740
        %1758 = vmatpush2.msra.mxu0 %v739
        %1759 = vmatprep.subr.mxu0 %v736
        %1760 = vmatpush2.msra.mxu0 %v735
        %1761 = vmatprep.subr.mxu0 %v732
        %1762 = vmatpush2.msra.mxu0 %v731
        %1763 = vmatprep.subr.mxu0 %v728
        %1764 = vmatpush2.msra.mxu0 %v727
        %1765 = vmatprep.subr.mxu0 %v724
        %1766 = vmatpush2.msra.mxu0 %v723
        %1767 = vmatprep.subr.mxu0 %v720
        %1768 = vmatpush2.msra.mxu0 %v719
        %1769 = vmatprep.subr.mxu0 %v716
        %1770 = vmatpush2.msra.mxu0 %v715
        %1771 = vmatprep.subr.mxu0 %v712
        %1772 = vmatpush2.msra.mxu0 %v711
        %1773 = vmatprep.subr.mxu0 %v708
        %1774 = vmatpush2.msra.mxu0 %v707
        %1775 = vmatprep.subr.mxu0 %v704
        %1776 = vmatpush2.msra.mxu0 %v703
        %1777 = vmatprep.subr.mxu0 %v700
        %1778 = vmatpush2.msra.mxu0 %v699
        %1779 = vmatprep.subr.mxu0 %v696
        %1780 = vmatpush2.msra.mxu0 %v695
        %1781 = vmatprep.subr.mxu0 %v692
        %1782 = vmatpush2.msra.mxu0 %v691
        %1783 = vmatprep.subr.mxu0 %v688
        %1784 = vmatpush2.msra.mxu0 %v687
        %1785 = vmatprep.mubr.f32.mxu0 %v1475
        %1786 = vmatmul.mubr.f32.gmra.mxu0 %v1649
        %v1787 = vpop.f32.mrf.mxu0
        %v1788 = vadd.f32 %v961, %v1787
        %v1789 = vpop.f32.mrf.mxu0
        %v1790 = vadd.f32 %v965, %v1789
        %1791 = vdwg.mxu0
        %v1792 = vxor.u32 %v1717, 2147483648
        %v1793 = vmul.f32 %v1792, 1.442695
        %v1794 = vpow.pop %v1793
        %v1795 = vadd.f32 %v1794, 1.0
        %v1796 = vrcp.pop %v1795
        %v1797 = vmul.f32 1.0, %v1796
        %v1798 = vxor.u32 %v1719, 2147483648
        %v1799 = vmul.f32 %v1798, 1.442695
        %v1800 = vpow.pop %v1799
        %v1801 = vadd.f32 %v1800, 1.0
        %v1802 = vrcp.pop %v1801
        %v1803 = vmul.f32 1.0, %v1802
        %v1804 = vtanh.pop %v1788
        %v1805 = vxor.u32 %v1790, 2147483648
        %v1806 = vmul.f32 %v1805, 1.442695
        %v1807 = vpow.pop %v1806
        %v1808 = vadd.f32 %v1807, 1.0
        %v1809 = vrcp.pop %v1808
        %v1810 = vmul.f32 1.0, %v1809
        %v1811 = vmul.f32 %v1803, %v1473
        %v1812 = vmul.f32 %v1797, %v1804
        %v1813 = vadd.f32 %v1811, %v1812
        %v1814 = vtanh.pop %v1813
        %v1815 = vmul.f32 %v1810, %v1814
        %1816 = vmatprep.subr.mxu0 %v617
        %1817 = vmatpush1.msra.mxu0 %v616
        %1818 = vmatprep.subr.mxu0 %v613
        %1819 = vmatpush1.msra.mxu0 %v612
        %1820 = vmatprep.subr.mxu0 %v609
        %1821 = vmatpush1.msra.mxu0 %v608
        %1822 = vmatprep.subr.mxu0 %v605
        %1823 = vmatpush1.msra.mxu0 %v604
        %1824 = vmatprep.subr.mxu0 %v601
        %1825 = vmatpush1.msra.mxu0 %v600
        %1826 = vmatprep.subr.mxu0 %v597
        %1827 = vmatpush1.msra.mxu0 %v596
        %1828 = vmatprep.subr.mxu0 %v593
        %1829 = vmatpush1.msra.mxu0 %v592
        %1830 = vmatprep.subr.mxu0 %v589
        %1831 = vmatpush1.msra.mxu0 %v588
        %1832 = vmatprep.subr.mxu0 %v585
        %1833 = vmatpush1.msra.mxu0 %v584
        %1834 = vmatprep.subr.mxu0 %v581
        %1835 = vmatpush1.msra.mxu0 %v580
        %1836 = vmatprep.subr.mxu0 %v577
        %1837 = vmatpush1.msra.mxu0 %v576
        %1838 = vmatprep.subr.mxu0 %v573
        %1839 = vmatpush1.msra.mxu0 %v572
        %1840 = vmatprep.subr.mxu0 %v569
        %1841 = vmatpush1.msra.mxu0 %v568
        %1842 = vmatprep.subr.mxu0 %v565
        %1843 = vmatpush1.msra.mxu0 %v564
        %1844 = vmatprep.subr.mxu0 %v561
        %1845 = vmatpush1.msra.mxu0 %v560
        %1846 = vmatprep.subr.mxu0 %v557
        %1847 = vmatpush1.msra.mxu0 %v556
        %1848 = vmatprep.subr.mxu0 0.0
        %1849 = vmatpush2.msra.mxu0 0.0
        %1850 = vmatprep.subr.mxu0 0.0
        %1851 = vmatpush2.msra.mxu0 0.0
        %1852 = vmatprep.subr.mxu0 0.0
        %1853 = vmatpush2.msra.mxu0 0.0
        %1854 = vmatprep.subr.mxu0 0.0
        %1855 = vmatpush2.msra.mxu0 0.0
        %1856 = vmatprep.subr.mxu0 0.0
        %1857 = vmatpush2.msra.mxu0 0.0
        %1858 = vmatprep.subr.mxu0 0.0
        %1859 = vmatpush2.msra.mxu0 0.0
        %1860 = vmatprep.subr.mxu0 0.0
        %1861 = vmatpush2.msra.mxu0 0.0
        %1862 = vmatprep.subr.mxu0 0.0
        %1863 = vmatpush2.msra.mxu0 0.0
        %1864 = vmatprep.subr.mxu0 0.0
        %1865 = vmatpush2.msra.mxu0 0.0
        %1866 = vmatprep.subr.mxu0 0.0
        %1867 = vmatpush2.msra.mxu0 0.0
        %1868 = vmatprep.subr.mxu0 0.0
        %1869 = vmatpush2.msra.mxu0 0.0
        %1870 = vmatprep.subr.mxu0 0.0
        %1871 = vmatpush2.msra.mxu0 0.0
        %1872 = vmatprep.subr.mxu0 0.0
        %1873 = vmatpush2.msra.mxu0 0.0
        %1874 = vmatprep.subr.mxu0 0.0
        %1875 = vmatpush2.msra.mxu0 0.0
        %1876 = vmatprep.subr.mxu0 0.0
        %1877 = vmatpush2.msra.mxu0 0.0
        %1878 = vmatprep.subr.mxu0 0.0
        %1879 = vmatpush2.msra.mxu0 0.0
        %1880 = vmatprep.mubr.f32.mxu0 0.0
        %1881 = vmatmul.mubr.f32.gmra.mxu0 %v1649
        %v1882 = vpop.f32.mrf.mxu0
        %v1883 = vadd.f32 0.0, %v1882
        %v1884 = vpop.f32.mrf.mxu0
        %v1885 = vadd.f32 0.0, %v1884
        %1886 = vdwg.mxu0
        %1887 = vmatprep.subr.mxu0 %v619
        %1888 = vmatpush1.msra.mxu0 %v618
        %1889 = vmatprep.subr.mxu0 %v615
        %1890 = vmatpush1.msra.mxu0 %v614
        %1891 = vmatprep.subr.mxu0 %v611
        %1892 = vmatpush1.msra.mxu0 %v610
        %1893 = vmatprep.subr.mxu0 %v607
        %1894 = vmatpush1.msra.mxu0 %v606
        %1895 = vmatprep.subr.mxu0 %v603
        %1896 = vmatpush1.msra.mxu0 %v602
        %1897 = vmatprep.subr.mxu0 %v599
        %1898 = vmatpush1.msra.mxu0 %v598
        %1899 = vmatprep.subr.mxu0 %v595
        %1900 = vmatpush1.msra.mxu0 %v594
        %1901 = vmatprep.subr.mxu0 %v591
        %1902 = vmatpush1.msra.mxu0 %v590
        %1903 = vmatprep.subr.mxu0 %v587
        %1904 = vmatpush1.msra.mxu0 %v586
        %1905 = vmatprep.subr.mxu0 %v583
        %1906 = vmatpush1.msra.mxu0 %v582
        %1907 = vmatprep.subr.mxu0 %v579
        %1908 = vmatpush1.msra.mxu0 %v578
        %1909 = vmatprep.subr.mxu0 %v575
        %1910 = vmatpush1.msra.mxu0 %v574
        %1911 = vmatprep.subr.mxu0 %v571
        %1912 = vmatpush1.msra.mxu0 %v570
        %1913 = vmatprep.subr.mxu0 %v567
        %1914 = vmatpush1.msra.mxu0 %v566
        %1915 = vmatprep.subr.mxu0 %v563
        %1916 = vmatpush1.msra.mxu0 %v562
        %1917 = vmatprep.subr.mxu0 %v559
        %1918 = vmatpush1.msra.mxu0 %v558
        %1919 = vmatprep.subr.mxu0 0.0
        %1920 = vmatpush2.msra.mxu0 0.0
        %1921 = vmatprep.subr.mxu0 0.0
        %1922 = vmatpush2.msra.mxu0 0.0
        %1923 = vmatprep.subr.mxu0 0.0
        %1924 = vmatpush2.msra.mxu0 0.0
        %1925 = vmatprep.subr.mxu0 0.0
        %1926 = vmatpush2.msra.mxu0 0.0
        %1927 = vmatprep.subr.mxu0 0.0
        %1928 = vmatpush2.msra.mxu0 0.0
        %1929 = vmatprep.subr.mxu0 0.0
        %1930 = vmatpush2.msra.mxu0 0.0
        %1931 = vmatprep.subr.mxu0 0.0
        %1932 = vmatpush2.msra.mxu0 0.0
        %1933 = vmatprep.subr.mxu0 0.0
        %1934 = vmatpush2.msra.mxu0 0.0
        %1935 = vmatprep.subr.mxu0 0.0
        %1936 = vmatpush2.msra.mxu0 0.0
        %1937 = vmatprep.subr.mxu0 0.0
        %1938 = vmatpush2.msra.mxu0 0.0
        %1939 = vmatprep.subr.mxu0 0.0
        %1940 = vmatpush2.msra.mxu0 0.0
        %1941 = vmatprep.subr.mxu0 0.0
        %1942 = vmatpush2.msra.mxu0 0.0
        %1943 = vmatprep.subr.mxu0 0.0
        %1944 = vmatpush2.msra.mxu0 0.0
        %1945 = vmatprep.subr.mxu0 0.0
        %1946 = vmatpush2.msra.mxu0 0.0
        %1947 = vmatprep.subr.mxu0 0.0
        %1948 = vmatpush2.msra.mxu0 0.0
        %1949 = vmatprep.subr.mxu0 0.0
        %1950 = vmatpush2.msra.mxu0 0.0
        %1951 = vmatprep.mubr.f32.mxu0 0.0
        %1952 = vmatmul.mubr.f32.gmra.mxu0 %v1649
        %v1953 = vpop.f32.mrf.mxu0
        %v1954 = vadd.f32 0.0, %v1953
        %v1955 = vpop.f32.mrf.mxu0
        %v1956 = vadd.f32 0.0, %v1955
        %1957 = vdwg.mxu0
        %v1958 = vadd.f32 %v463, %v1883
        %v1959 = vadd.f32 %v465, %v1885
        %v1960 = vadd.f32 %v552, %v1954
        %v1961 = vadd.f32 %v554, %v1956
        %v1962 = vadd.f32 %v1958, %v904
        %v1963 = vadd.f32 %v1959, %v908
        %v1964 = vadd.f32 %v1960, %v912
        %v1965 = vadd.f32 %v1961, %v916
        %v1966 = vxor.u32 %v1962, 2147483648
        %v1967 = vmul.f32 %v1966, 1.442695
        %v1968 = vpow.pop %v1967
        %v1969 = vadd.f32 %v1968, 1.0
        %v1970 = vrcp.pop %v1969
        %v1971 = vmul.f32 1.0, %v1970
        %v1972 = vxor.u32 %v1963, 2147483648
        %v1973 = vmul.f32 %v1972, 1.442695
        %v1974 = vpow.pop %v1973
        %v1975 = vadd.f32 %v1974, 1.0
        %v1976 = vrcp.pop %v1975
        %v1977 = vmul.f32 1.0, %v1976
        %v1978 = vtanh.pop %v1964
        %v1979 = vxor.u32 %v1965, 2147483648
        %v1980 = vmul.f32 %v1979, 1.442695
        %v1981 = vpow.pop %v1980
        %v1982 = vadd.f32 %v1981, 1.0
        %v1983 = vrcp.pop %v1982
        %v1984 = vmul.f32 1.0, %v1983
        %v1985 = vmul.f32 %v1977, %v1647
        %v1986 = vmul.f32 %v1971, %v1978
        %v1987 = vadd.f32 %v1985, %v1986
        %v1988 = vtanh.pop %v1987
        %v1989 = vmul.f32 %v1984, %v1988
        %1990 = vmatprep.subr.mxu0 %v682
        %1991 = vmatpush1.msra.mxu0 %v681
        %1992 = vmatprep.subr.mxu0 %v678
        %1993 = vmatpush1.msra.mxu0 %v677
        %1994 = vmatprep.subr.mxu0 %v674
        %1995 = vmatpush1.msra.mxu0 %v673
        %1996 = vmatprep.subr.mxu0 %v670
        %1997 = vmatpush1.msra.mxu0 %v669
        %1998 = vmatprep.subr.mxu0 %v666
        %1999 = vmatpush1.msra.mxu0 %v665
        %2000 = vmatprep.subr.mxu0 %v662
        %2001 = vmatpush1.msra.mxu0 %v661
        %2002 = vmatprep.subr.mxu0 %v658
        %2003 = vmatpush1.msra.mxu0 %v657
        %2004 = vmatprep.subr.mxu0 %v654
        %2005 = vmatpush1.msra.mxu0 %v653
        %2006 = vmatprep.subr.mxu0 %v650
        %2007 = vmatpush1.msra.mxu0 %v649
        %2008 = vmatprep.subr.mxu0 %v646
        %2009 = vmatpush1.msra.mxu0 %v645
        %2010 = vmatprep.subr.mxu0 %v642
        %2011 = vmatpush1.msra.mxu0 %v641
        %2012 = vmatprep.subr.mxu0 %v638
        %2013 = vmatpush1.msra.mxu0 %v637
        %2014 = vmatprep.subr.mxu0 %v634
        %2015 = vmatpush1.msra.mxu0 %v633
        %2016 = vmatprep.subr.mxu0 %v630
        %2017 = vmatpush1.msra.mxu0 %v629
        %2018 = vmatprep.subr.mxu0 %v626
        %2019 = vmatpush1.msra.mxu0 %v625
        %2020 = vmatprep.subr.mxu0 %v622
        %2021 = vmatpush1.msra.mxu0 %v621
        %2022 = vmatprep.subr.mxu0 %v746
        %2023 = vmatpush2.msra.mxu0 %v745
        %2024 = vmatprep.subr.mxu0 %v742
        %2025 = vmatpush2.msra.mxu0 %v741
        %2026 = vmatprep.subr.mxu0 %v738
        %2027 = vmatpush2.msra.mxu0 %v737
        %2028 = vmatprep.subr.mxu0 %v734
        %2029 = vmatpush2.msra.mxu0 %v733
        %2030 = vmatprep.subr.mxu0 %v730
        %2031 = vmatpush2.msra.mxu0 %v729
        %2032 = vmatprep.subr.mxu0 %v726
        %2033 = vmatpush2.msra.mxu0 %v725
        %2034 = vmatprep.subr.mxu0 %v722
        %2035 = vmatpush2.msra.mxu0 %v721
        %2036 = vmatprep.subr.mxu0 %v718
        %2037 = vmatpush2.msra.mxu0 %v717
        %2038 = vmatprep.subr.mxu0 %v714
        %2039 = vmatpush2.msra.mxu0 %v713
        %2040 = vmatprep.subr.mxu0 %v710
        %2041 = vmatpush2.msra.mxu0 %v709
        %2042 = vmatprep.subr.mxu0 %v706
        %2043 = vmatpush2.msra.mxu0 %v705
        %2044 = vmatprep.subr.mxu0 %v702
        %2045 = vmatpush2.msra.mxu0 %v701
        %2046 = vmatprep.subr.mxu0 %v698
        %2047 = vmatpush2.msra.mxu0 %v697
        %2048 = vmatprep.subr.mxu0 %v694
        %2049 = vmatpush2.msra.mxu0 %v693
        %2050 = vmatprep.subr.mxu0 %v690
        %2051 = vmatpush2.msra.mxu0 %v689
        %2052 = vmatprep.subr.mxu0 %v686
        %2053 = vmatpush2.msra.mxu0 %v685
        %2054 = vmatprep.mubr.f32.mxu0 %v1815
        %2055 = vmatmul.mubr.f32.gmra.mxu0 %v1989
        %v2056 = vpop.f32.mrf.mxu0
        %v2057 = vadd.f32 %v953, %v2056
        %v2058 = vpop.f32.mrf.mxu0
        %v2059 = vadd.f32 %v957, %v2058
        %2060 = vdwg.mxu0
        %2061 = vmatprep.subr.mxu0 %v684
        %2062 = vmatpush1.msra.mxu0 %v683
        %2063 = vmatprep.subr.mxu0 %v680
        %2064 = vmatpush1.msra.mxu0 %v679
        %2065 = vmatprep.subr.mxu0 %v676
        %2066 = vmatpush1.msra.mxu0 %v675
        %2067 = vmatprep.subr.mxu0 %v672
        %2068 = vmatpush1.msra.mxu0 %v671
        %2069 = vmatprep.subr.mxu0 %v668
        %2070 = vmatpush1.msra.mxu0 %v667
        %2071 = vmatprep.subr.mxu0 %v664
        %2072 = vmatpush1.msra.mxu0 %v663
        %2073 = vmatprep.subr.mxu0 %v660
        %2074 = vmatpush1.msra.mxu0 %v659
        %2075 = vmatprep.subr.mxu0 %v656
        %2076 = vmatpush1.msra.mxu0 %v655
        %2077 = vmatprep.subr.mxu0 %v652
        %2078 = vmatpush1.msra.mxu0 %v651
        %2079 = vmatprep.subr.mxu0 %v648
        %2080 = vmatpush1.msra.mxu0 %v647
        %2081 = vmatprep.subr.mxu0 %v644
        %2082 = vmatpush1.msra.mxu0 %v643
        %2083 = vmatprep.subr.mxu0 %v640
        %2084 = vmatpush1.msra.mxu0 %v639
        %2085 = vmatprep.subr.mxu0 %v636
        %2086 = vmatpush1.msra.mxu0 %v635
        %2087 = vmatprep.subr.mxu0 %v632
        %2088 = vmatpush1.msra.mxu0 %v631
        %2089 = vmatprep.subr.mxu0 %v628
        %2090 = vmatpush1.msra.mxu0 %v627
        %2091 = vmatprep.subr.mxu0 %v624
        %2092 = vmatpush1.msra.mxu0 %v623
        %2093 = vmatprep.subr.mxu0 %v748
        %2094 = vmatpush2.msra.mxu0 %v747
        %2095 = vmatprep.subr.mxu0 %v744
        %2096 = vmatpush2.msra.mxu0 %v743
        %2097 = vmatprep.subr.mxu0 %v740
        %2098 = vmatpush2.msra.mxu0 %v739
        %2099 = vmatprep.subr.mxu0 %v736
        %2100 = vmatpush2.msra.mxu0 %v735
        %2101 = vmatprep.subr.mxu0 %v732
        %2102 = vmatpush2.msra.mxu0 %v731
        %2103 = vmatprep.subr.mxu0 %v728
        %2104 = vmatpush2.msra.mxu0 %v727
        %2105 = vmatprep.subr.mxu0 %v724
        %2106 = vmatpush2.msra.mxu0 %v723
        %2107 = vmatprep.subr.mxu0 %v720
        %2108 = vmatpush2.msra.mxu0 %v719
        %2109 = vmatprep.subr.mxu0 %v716
        %2110 = vmatpush2.msra.mxu0 %v715
        %2111 = vmatprep.subr.mxu0 %v712
        %2112 = vmatpush2.msra.mxu0 %v711
        %2113 = vmatprep.subr.mxu0 %v708
        %2114 = vmatpush2.msra.mxu0 %v707
        %2115 = vmatprep.subr.mxu0 %v704
        %2116 = vmatpush2.msra.mxu0 %v703
        %2117 = vmatprep.subr.mxu0 %v700
        %2118 = vmatpush2.msra.mxu0 %v699
        %2119 = vmatprep.subr.mxu0 %v696
        %2120 = vmatpush2.msra.mxu0 %v695
        %2121 = vmatprep.subr.mxu0 %v692
        %2122 = vmatpush2.msra.mxu0 %v691
        %2123 = vmatprep.subr.mxu0 %v688
        %2124 = vmatpush2.msra.mxu0 %v687
        %2125 = vmatprep.mubr.f32.mxu0 %v1815
        %2126 = vmatmul.mubr.f32.gmra.mxu0 %v1989
        %v2127 = vpop.f32.mrf.mxu0
        %v2128 = vadd.f32 %v961, %v2127
        %v2129 = vpop.f32.mrf.mxu0
        %v2130 = vadd.f32 %v965, %v2129
        %2131 = vdwg.mxu0
        %v2132 = vxor.u32 %v2057, 2147483648
        %v2133 = vmul.f32 %v2132, 1.442695
        %v2134 = vpow.pop %v2133
        %v2135 = vadd.f32 %v2134, 1.0
        %v2136 = vrcp.pop %v2135
        %v2137 = vmul.f32 1.0, %v2136
        %v2138 = vxor.u32 %v2059, 2147483648
        %v2139 = vmul.f32 %v2138, 1.442695
        %v2140 = vpow.pop %v2139
        %v2141 = vadd.f32 %v2140, 1.0
        %v2142 = vrcp.pop %v2141
        %v2143 = vmul.f32 1.0, %v2142
        %v2144 = vtanh.pop %v2128
        %v2145 = vxor.u32 %v2130, 2147483648
        %v2146 = vmul.f32 %v2145, 1.442695
        %v2147 = vpow.pop %v2146
        %v2148 = vadd.f32 %v2147, 1.0
        %v2149 = vrcp.pop %v2148
        %v2150 = vmul.f32 1.0, %v2149
        %v2151 = vmul.f32 %v2143, %v1813
        %v2152 = vmul.f32 %v2137, %v2144
        %v2153 = vadd.f32 %v2151, %v2152
        %v2154 = vtanh.pop %v2153
        %v2155 = vmul.f32 %v2150, %v2154
        %2156 = vst [vmem:[#allocation2] sm:$0xff] %v1989
        %2157 = vst [vmem:[#allocation3] sm:$0xff] %v1987
        %2158 = vst [vmem:[#allocation4] sm:$0xff] %v2155
        %2159 = vst [vmem:[#allocation5] sm:$0xff] %v2153
        %p2160 = scmp.eq.s32.totalorder %s22, 1
        // Predicated region
        $region69: #{tpu_custom_call.1} parent=51 // pred_check
          %p2161 = pneg %p2160
        $region70: #{tpu_custom_call.1} parent=51 // pred_check_branch
          %2163 = sbr.rel (%p2161) target = $region72
        $region71: #{tpu_custom_call.1} parent=51 // pred_region
          %v2164 = vld [vmem:[#allocation11] sm:$0xff]
          %v2165 = vld [vmem:[#allocation11 + $0x8] sm:$0xff]
          %v2166 = vld [vmem:[#allocation11 + $0x10] sm:$0xff]
          %v2167 = vld [vmem:[#allocation11 + $0x18] sm:$0xff]
          %v2168 = vld [vmem:[#allocation11 + $0x20] sm:$0xff]
          %v2169 = vld [vmem:[#allocation11 + $0x28] sm:$0xff]
          %v2170 = vld [vmem:[#allocation11 + $0x30] sm:$0xff]
          %v2171 = vld [vmem:[#allocation11 + $0x38] sm:$0xff]
          %v2172 = vld [vmem:[#allocation11 + $0x40] sm:$0xff]
          %v2173 = vld [vmem:[#allocation11 + $0x48] sm:$0xff]
          %v2174 = vld [vmem:[#allocation11 + $0x50] sm:$0xff]
          %v2175 = vld [vmem:[#allocation11 + $0x58] sm:$0xff]
          %v2176 = vld [vmem:[#allocation11 + $0x60] sm:$0xff]
          %v2177 = vld [vmem:[#allocation11 + $0x68] sm:$0xff]
          %v2178 = vld [vmem:[#allocation11 + $0x70] sm:$0xff]
          %v2179 = vld [vmem:[#allocation11 + $0x78] sm:$0xff]
          %v2180 = vld [vmem:[%s7] sm:$0x1]
          %v2182 = vlaneseq
          %v2183 = vshrl.u32 %v2182, 7
          %v2184 = vsub.s32 0, %v2183
          %v2185 = vrot.slane %v2180, %v2184
          %2187 = vmatprep.subr.mxu0 0.0
          %2188 = vmatpush1.msra.mxu0 %v2179
          %2189 = vmatprep.subr.mxu0 0.0
          %2190 = vmatpush1.msra.mxu0 %v2178
          %2191 = vmatprep.subr.mxu0 0.0
          %2192 = vmatpush1.msra.mxu0 %v2177
          %2193 = vmatprep.subr.mxu0 0.0
          %2194 = vmatpush1.msra.mxu0 %v2176
          %2195 = vmatprep.subr.mxu0 0.0
          %2196 = vmatpush1.msra.mxu0 %v2175
          %2197 = vmatprep.subr.mxu0 0.0
          %2198 = vmatpush1.msra.mxu0 %v2174
          %2199 = vmatprep.subr.mxu0 0.0
          %2200 = vmatpush1.msra.mxu0 %v2173
          %2201 = vmatprep.subr.mxu0 0.0
          %2202 = vmatpush1.msra.mxu0 %v2172
          %2203 = vmatprep.subr.mxu0 0.0
          %2204 = vmatpush1.msra.mxu0 %v2171
          %2205 = vmatprep.subr.mxu0 0.0
          %2206 = vmatpush1.msra.mxu0 %v2170
          %2207 = vmatprep.subr.mxu0 0.0
          %2208 = vmatpush1.msra.mxu0 %v2169
          %2209 = vmatprep.subr.mxu0 0.0
          %2210 = vmatpush1.msra.mxu0 %v2168
          %2211 = vmatprep.subr.mxu0 0.0
          %2212 = vmatpush1.msra.mxu0 %v2167
          %2213 = vmatprep.subr.mxu0 0.0
          %2214 = vmatpush1.msra.mxu0 %v2166
          %2215 = vmatprep.subr.mxu0 0.0
          %2216 = vmatpush1.msra.mxu0 %v2165
          %2217 = vmatprep.subr.mxu0 0.0
          %2218 = vmatpush1.msra.mxu0 %v2164
          %2219 = vmatprep.subr.mxu0 0.0
          %2220 = vmatpush2.msra.mxu0 0.0
          %2221 = vmatprep.subr.mxu0 0.0
          %2222 = vmatpush2.msra.mxu0 0.0
          %2223 = vmatprep.subr.mxu0 0.0
          %2224 = vmatpush2.msra.mxu0 0.0
          %2225 = vmatprep.subr.mxu0 0.0
          %2226 = vmatpush2.msra.mxu0 0.0
          %2227 = vmatprep.subr.mxu0 0.0
          %2228 = vmatpush2.msra.mxu0 0.0
          %2229 = vmatprep.subr.mxu0 0.0
          %2230 = vmatpush2.msra.mxu0 0.0
          %2231 = vmatprep.subr.mxu0 0.0
          %2232 = vmatpush2.msra.mxu0 0.0
          %2233 = vmatprep.subr.mxu0 0.0
          %2234 = vmatpush2.msra.mxu0 0.0
          %2235 = vmatprep.subr.mxu0 0.0
          %2236 = vmatpush2.msra.mxu0 0.0
          %2237 = vmatprep.subr.mxu0 0.0
          %2238 = vmatpush2.msra.mxu0 0.0
          %2239 = vmatprep.subr.mxu0 0.0
          %2240 = vmatpush2.msra.mxu0 0.0
          %2241 = vmatprep.subr.mxu0 0.0
          %2242 = vmatpush2.msra.mxu0 0.0
          %2243 = vmatprep.subr.mxu0 0.0
          %2244 = vmatpush2.msra.mxu0 0.0
          %2245 = vmatprep.subr.mxu0 0.0
          %2246 = vmatpush2.msra.mxu0 0.0
          %2247 = vmatprep.subr.mxu0 0.0
          %2248 = vmatpush2.msra.mxu0 0.0
          %2249 = vmatprep.subr.mxu0 0.0
          %2250 = vmatpush2.msra.mxu0 0.0
          %2251 = vmatprep.mubr.f32.mxu0 0.0
          %2252 = vmatmul.mubr.f32.gmra.mxu0 %v2155
          %v2253 = vpop.f32.mrf.mxu0
          %v2254 = vadd.f32 %v2185, %v2253
          %v2255 = vpop.f32.mrf.mxu0
          %2256 = vdwg.mxu0
          %2257 = vst [vmem:[#allocation12] sm:$0xff] %v2254
        $region72: #{tpu_custom_call.1} parent=51 // pred_fallthru
          _
        // Predicated region
        $region73: #{tpu_custom_call.1} parent=51 // pred_check
          %p2258 = pneg %p208
        $region74: #{tpu_custom_call.1} parent=51 // pred_check_branch
          %2260 = sbr.rel (%p2258) target = $region76
        $region75: #{tpu_custom_call.1} parent=51 // pred_region
          %s2262 = ssub.s32 128, 128
          %2263 = vsyncadd [#allocation8], %s2262
          %s2265 = sshll.u32 [#allocation12], 4
          %s2266 = int_to_ptr.vmem [resolvable:$true] %s2265
          %2268 = dma.vmem_to_hbm [thread:$0]  %s2266, 128, %s8, [#allocation8]
        $region76: #{tpu_custom_call.1} parent=51 // pred_fallthru
          _
        // Predicated region
        $region77: #{tpu_custom_call.1} parent=51 // pred_check
          %p2269 = pneg %p208
        $region78: #{tpu_custom_call.1} parent=51 // pred_check_branch
          %2271 = sbr.rel (%p2269) target = $region80
        $region79: #{tpu_custom_call.1} parent=51 // pred_region
          %2272 = dma.done [#allocation8], 128
        $region80: #{tpu_custom_call.1} parent=51 // pred_fallthru
          _
      $region52: #{tpu_custom_call.1} parent=5 // pred_fallthru
        _
      %p2273 = scmp.le.s32.totalorder 2, %s17
      // Predicated region
      $region81: #{tpu_custom_call.1} parent=5 // pred_check
        %p2274 = pneg %p2273
      $region82: #{tpu_custom_call.1} parent=5 // pred_check_branch
        %2276 = sbr.rel (%p2274) target = $region84
      $region83: #{tpu_custom_call.1} parent=5 // pred_region
        %s2277 = ssub.s32 %s17, 2
      $region84: #{tpu_custom_call.1} parent=5 // pred_fallthru
        _
    $region6: #{tpu_custom_call.1} parent=1 // loop_footer
      %s21 = sadd.s32 1, %s17
    $region7: #{tpu_custom_call.1} parent=1 // loop_footer_branch
      %16 = sbr.rel target = $region3
    $region8: #{tpu_custom_call.1} parent=1 // loop_exit
      _
    %2278 = vsyncpa [#allocation7], 1
    %s2279 = scalar_lea.sflag [#allocation7], 1
    %2280 = vsyncpa %s2279, 1
    %2281 = vsyncpa [#allocation10], 1
    %2282 = vsyncpa [#allocation8], 1
    %s2283 = scalar_lea.sflag [#allocation8], 1
    %2284 = vsyncpa %s2283, 1

</llo_original>
